<compile_context>
chip_gen: v6e
topology: v6e:2x2x1
jax: 0.10.0
libtpu: 0.0.40
codegen_flags: <defaults>
</compile_context>

<pallas_src>
import functools
import math

import jax
import jax.numpy as jnp
from jax import lax
from jax.experimental import pallas as pl
from jax.experimental.pallas import tpu as pltpu


def _silu(v):
    return v * jax.nn.sigmoid(v)


def _stacked_taps(x2d, mask_ref, W):
    """(C, hw) -> (9*C, hw): 9 shifted, halo-masked copies stacked along sublanes."""
    hw = x2d.shape[-1]
    taps = []
    for i in range(3):
        for j in range(3):
            d = (i - 1) * W + (j - 1)
            if d == 0:
                taps.append(x2d)
            else:
                # shifted[p] = x2d[p + d]; wrap-around positions are zeroed by the mask.
                shifted = pltpu.roll(x2d, (-d) % hw, axis=1)
                taps.append(shifted * mask_ref[i * 3 + j])
    return jnp.concatenate(taps, axis=0)


def _gn_affine(h_raw, bias_col, gamma_col, beta_col, sg_ref, hw, eps,
               scale_col=None, shift_col=None):
    """GroupNorm(+conv bias)(+time scale/shift) fused into one per-channel affine.

    h_raw is the *pre-bias* conv output; the bias only enters the statistics and the
    affine offset, so no (C, hw) bias add is ever materialized.
    """
    n_hw = jnp.float32(hw)
    s1 = jnp.sum(h_raw, axis=1, keepdims=True)              # (C, 1)
    s2 = jnp.sum(h_raw * h_raw, axis=1, keepdims=True)      # (C, 1)
    # statistics of u = h_raw + bias
    s1b = s1 + n_hw * bias_col
    s2b = s2 + 2.0 * bias_col * s1 + n_hw * bias_col * bias_col
    # sg_ref: same-group indicator pre-divided by (channels_per_group * hw).
    stats = jnp.dot(sg_ref[...], jnp.concatenate([s1b, s2b], axis=1),
                    preferred_element_type=jnp.float32)     # (C, 2) = [mean, E[u^2]]
    mean = stats[:, 0:1]
    var = stats[:, 1:2] - mean * mean
    # NOTE: single-pass variance (E[x^2]-mean^2) is fine in f32 at these magnitudes;
    # switch to a centered two-pass if activations move to bf16.
    inv = lax.rsqrt(var + jnp.float32(eps))
    g = inv * gamma_col
    b_aff = (bias_col - mean) * g + beta_col
    if scale_col is not None:
        g = g * (scale_col + 1.0)
        b_aff = b_aff * (scale_col + 1.0) + shift_col
    return h_raw * g + b_aff


def _resnet_block_kernel(x_ref, scale_ref, shift_ref, mask_ref, sg_ref,
                         w1_ref, b1_ref, g1_ref, be1_ref,
                         w2_ref, b2_ref, g2_ref, be2_ref,
                         *rest, eps, H, W, has_res):
    if has_res:
        wres_ref, bres_ref, o_ref = rest
    else:
        (o_ref,) = rest

    hw = H * W
    x = x_ref[0]                                   # (C_in_p, H*W)

    # Block 1: conv3x3 (single stacked matmul) -> fused GN + (scale,shift) -> SiLU.
    h = jnp.dot(w1_ref[...], _stacked_taps(x, mask_ref, W),
                preferred_element_type=jnp.float32)
    h = _gn_affine(h, b1_ref[...], g1_ref[...], be1_ref[...], sg_ref, hw, eps,
                   scale_col=scale_ref[0], shift_col=shift_ref[0])
    h = _silu(h)

    # Block 2: conv3x3 -> fused GN -> SiLU.
    h = jnp.dot(w2_ref[...], _stacked_taps(h, mask_ref, W),
                preferred_element_type=jnp.float32)
    h = _gn_affine(h, b2_ref[...], g2_ref[...], be2_ref[...], sg_ref, hw, eps)
    h = _silu(h)

    # Residual path: 1x1 conv only when dim != dim_out, otherwise a plain add.
    if has_res:
        res = jnp.dot(wres_ref[...], x,
                      preferred_element_type=jnp.float32) + bres_ref[...]
    else:
        res = x[:o_ref.shape[1], :]

    o_ref[0] = (h + res).astype(o_ref.dtype)


def resnet_block(x, time_emb, p, *, groups=8, eps=1e-5):
    """Fused ResnetBlock forward.  x: (B, C_in, H, W), time_emb: (B, T)."""
    B, C_in, H, W = x.shape
    hw = H * W
    C_out = p["conv1_w"].shape[0]
    assert C_out % groups == 0
    assert C_out % 8 == 0, "C_out should be sublane aligned (groups=8 usage guarantees it)"
    assert hw % 128 == 0, "H*W should be a multiple of 128 for lane-dense tiles"

    f32 = jnp.float32
    col = lambda v: v.reshape(-1, 1).astype(f32)

    # Pad input channels to a sublane multiple so stacked taps stay (8,128)-aligned.
    C_in_p = (C_in + 7) // 8 * 8
    x_flat = x.reshape(B, C_in, hw).astype(f32)
    if C_in_p != C_in:
        x_flat = jnp.pad(x_flat, ((0, 0), (0, C_in_p - C_in), (0, 0)))

    def stack_w(w, cin, cin_p):
        # (C_out, cin, 3, 3) -> (C_out, 9*cin_p); column index = tap*cin_p + c.
        wt = jnp.transpose(w, (2, 3, 0, 1)).reshape(9, w.shape[0], cin)
        if cin_p != cin:
            wt = jnp.pad(wt, ((0, 0), (0, 0), (0, cin_p - cin)))
        return jnp.transpose(wt, (1, 0, 2)).reshape(w.shape[0], 9 * cin_p).astype(f32)

    w1_stk = stack_w(p["conv1_w"], C_in, C_in_p)
    w2_stk = stack_w(p["conv2_w"], C_out, C_out)

    # Time-embedding MLP in plain XLA (tiny matvec -> poor MXU fit inside the kernel).
    ss = _silu(time_emb.astype(f32)) @ p["mlp_w"].T.astype(f32) + p["mlp_b"].astype(f32)
    scale = ss[:, :C_out].reshape(B, C_out, 1)
    shift = ss[:, C_out:].reshape(B, C_out, 1)

    # Grid-invariant constants, hoisted out of the kernel (DMA'd once, VMEM-resident).
    pos = jnp.arange(hw)
    yy, xx = pos // W, pos % W
    mlist = []
    for dy in (-1, 0, 1):
        for dx in (-1, 0, 1):
            valid = (yy + dy >= 0) & (yy + dy < H) & (xx + dx >= 0) & (xx + dx < W)
            mlist.append(valid.astype(f32))
    mask9 = jnp.stack(mlist).reshape(9, 1, hw)

    cpg = C_out // groups
    ch = jnp.arange(C_out)
    same_over_n = ((ch[:, None] // cpg) == (ch[None, :] // cpg)).astype(f32) / float(cpg * hw)

    has_res = p.get("res_w") is not None
    inputs = [
        x_flat, scale, shift, mask9, same_over_n,
        w1_stk, col(p["conv1_b"]), col(p["gn1_w"]), col(p["gn1_b"]),
        w2_stk, col(p["conv2_b"]), col(p["gn2_w"]), col(p["gn2_b"]),
    ]
    if has_res:
        w_res = p["res_w"].reshape(C_out, C_in).astype(f32)
        if C_in_p != C_in:
            w_res = jnp.pad(w_res, ((0, 0), (0, C_in_p - C_in)))
        inputs += [w_res, col(p["res_b"])]
    else:
        assert C_in == C_out

    def full(a):
        nd = a.ndim
        return pl.BlockSpec(a.shape, lambda b: (0,) * nd)

    in_specs = [
        pl.BlockSpec((1, C_in_p, hw), lambda b: (b, 0, 0)),   # x
        pl.BlockSpec((1, C_out, 1), lambda b: (b, 0, 0)),     # scale column
        pl.BlockSpec((1, C_out, 1), lambda b: (b, 0, 0)),     # shift column
    ] + [full(a) for a in inputs[3:]]                         # constants / weights
    out_spec = pl.BlockSpec((1, C_out, hw), lambda b: (b, 0, 0))

    # Advisory cost estimate.
    matmul_flops = 2 * hw * (C_out * 9 * C_in_p + C_out * 9 * C_out
                             + (C_out * C_in_p if has_res else 0))
    elementwise = hw * (9 * (C_in_p + C_out) + 14 * C_out)
    flops = B * (matmul_flops + elementwise + 8 * C_out * C_out)
    transcendentals = B * 2 * C_out * hw
    bytes_accessed = (sum(int(a.size) * a.dtype.itemsize for a in inputs)
                      + B * C_out * hw * x.dtype.itemsize)

    kernel = functools.partial(_resnet_block_kernel, eps=eps, H=H, W=W, has_res=has_res)

    out_flat = pl.pallas_call(
        kernel,
        out_shape=jax.ShapeDtypeStruct((B, C_out, hw), x.dtype),
        grid=(B,),
        in_specs=in_specs,
        out_specs=out_spec,
        compiler_params=pltpu.CompilerParams(
            dimension_semantics=("parallel",)),
        cost_estimate=pl.CostEstimate(
            flops=int(flops),
            transcendentals=int(transcendentals),
            bytes_accessed=int(bytes_accessed)),
    )(*inputs)
    return out_flat.reshape(B, C_out, H, W)


def _reference(x, time_emb, p, *, groups=8, eps=1e-5):
    def silu(v):
        return v * jax.nn.sigmoid(v)

    def conv(v, w, b, pad):
        out = lax.conv_general_dilated(
            v, w, window_strides=(1, 1), padding=pad,
            dimension_numbers=("NCHW", "OIHW", "NCHW"))
        return out + b[None, :, None, None]

    def group_norm(v, gamma, beta):
        B, C, H, W = v.shape
        vg = v.reshape(B, groups, C // groups, H, W)
        mean = vg.mean(axis=(2, 3, 4), keepdims=True)
        var = vg.var(axis=(2, 3, 4), keepdims=True)
        v = ((vg - mean) / jnp.sqrt(var + eps)).reshape(B, C, H, W)
        return v * gamma[None, :, None, None] + beta[None, :, None, None]

    C_out = p["conv1_w"].shape[0]
    ss = silu(time_emb) @ p["mlp_w"].T + p["mlp_b"]
    scale, shift = ss[:, :C_out], ss[:, C_out:]

    h = conv(x, p["conv1_w"], p["conv1_b"], "SAME")
    h = group_norm(h, p["gn1_w"], p["gn1_b"])
    h = h * (scale[:, :, None, None] + 1.0) + shift[:, :, None, None]
    h = silu(h)

    h = conv(h, p["conv2_w"], p["conv2_b"], "SAME")
    h = group_norm(h, p["gn2_w"], p["gn2_b"])
    h = silu(h)

    res = x if p.get("res_w") is None else conv(x, p["res_w"], p["res_b"], "VALID")
    return h + res


def _make_params(key, C_in, C_out, T, with_res):
    ks = jax.random.split(key, 14)

    def uni(k, shape, fan_in):
        s = 1.0 / math.sqrt(fan_in)
        return jax.random.uniform(k, shape, jnp.float32, -s, s)

    p = {
        "mlp_w": uni(ks[0], (2 * C_out, T), T),
        "mlp_b": uni(ks[1], (2 * C_out,), T),
        "conv1_w": uni(ks[2], (C_out, C_in, 3, 3), C_in * 9),
        "conv1_b": uni(ks[3], (C_out,), C_in * 9),
        "gn1_w": 1.0 + 0.1 * jax.random.normal(ks[4], (C_out,), jnp.float32),
        "gn1_b": 0.1 * jax.random.normal(ks[5], (C_out,), jnp.float32),
        "conv2_w": uni(ks[6], (C_out, C_out, 3, 3), C_out * 9),
        "conv2_b": uni(ks[7], (C_out,), C_out * 9),
        "gn2_w": 1.0 + 0.1 * jax.random.normal(ks[8], (C_out,), jnp.float32),
        "gn2_b": 0.1 * jax.random.normal(ks[9], (C_out,), jnp.float32),
    }
    if with_res:
        p["res_w"] = uni(ks[10], (C_out, C_in, 1, 1), C_in)
        p["res_b"] = uni(ks[11], (C_out,), C_in)
    else:
        p["res_w"] = None
        p["res_b"] = None
    return p


if __name__ == "__main__":
    key = jax.random.PRNGKey(0)
    k_x, k_t, k_p1, k_x2, k_p2 = jax.random.split(key, 5)

    B, H, W, T, groups = 2, 16, 16, 32, 8

    # Case 1: dim != dim_out (1x1 residual conv path).
    C_in, C_out = 4, 16
    x = jax.random.normal(k_x, (B, C_in, H, W), jnp.float32)
    time_emb = jax.random.normal(k_t, (B, T), jnp.float32)
    p = _make_params(k_p1, C_in, C_out, T, with_res=True)

    out = jax.block_until_ready(resnet_block(x, time_emb, p, groups=groups))
    ref = _reference(x, time_emb, p, groups=groups)
    assert out.shape == (B, C_out, H, W)
    assert jnp.allclose(out, ref, atol=1e-3, rtol=1e-3), \
        float(jnp.max(jnp.abs(out - ref)))

    # Case 2: dim == dim_out (identity residual -> specialized kernel, no res matmul).
    C_in2 = C_out2 = 16
    x2 = jax.random.normal(k_x2, (B, C_in2, H, W), jnp.float32)
    p2 = _make_params(k_p2, C_in2, C_out2, T, with_res=False)

    out2 = jax.block_until_ready(resnet_block(x2, time_emb, p2, groups=groups))
    ref2 = _reference(x2, time_emb, p2, groups=groups)
    assert out2.shape == (B, C_out2, H, W)
    assert jnp.allclose(out2, ref2, atol=1e-3, rtol=1e-3), \
        float(jnp.max(jnp.abs(out2 - ref2)))

    print("KERNEL_OK")
</pallas_src>

<mosaic_0001>
module attributes {stable_mosaic.version = 11 : i64} {
  func.func @_resnet_block_kernel(%arg0: i32, %arg1: memref<1x8x256xf32, #tpu.memory_space<vmem>>, %arg2: memref<1x16x1xf32, #tpu.memory_space<vmem>>, %arg3: memref<1x16x1xf32, #tpu.memory_space<vmem>>, %arg4: memref<9x1x256xf32, #tpu.memory_space<vmem>>, %arg5: memref<16x16xf32, #tpu.memory_space<vmem>>, %arg6: memref<16x72xf32, #tpu.memory_space<vmem>>, %arg7: memref<16x1xf32, #tpu.memory_space<vmem>>, %arg8: memref<16x1xf32, #tpu.memory_space<vmem>>, %arg9: memref<16x1xf32, #tpu.memory_space<vmem>>, %arg10: memref<16x144xf32, #tpu.memory_space<vmem>>, %arg11: memref<16x1xf32, #tpu.memory_space<vmem>>, %arg12: memref<16x1xf32, #tpu.memory_space<vmem>>, %arg13: memref<16x1xf32, #tpu.memory_space<vmem>>, %arg14: memref<16x8xf32, #tpu.memory_space<vmem>>, %arg15: memref<16x1xf32, #tpu.memory_space<vmem>>, %arg16: memref<1x16x256xf32, #tpu.memory_space<vmem>>) attributes {dimension_semantics = [#tpu.dimension_semantics<parallel>], iteration_bounds = array<i64: 2>, scalar_prefetch = 0 : i64, scratch_operands = 0 : i64, tpu.core_type = #tpu.core_type<tc>, window_params = [{transform_indices = @transform_0, window_bounds = array<i64: 1, 8, 256>}, {transform_indices = @transform_1, window_bounds = array<i64: 1, 16, 1>}, {transform_indices = @transform_2, window_bounds = array<i64: 1, 16, 1>}, {pipeline_mode = #tpu.pipeline_mode<synchronous>, transform_indices = @transform_3, window_bounds = array<i64: 9, 1, 256>}, {pipeline_mode = #tpu.pipeline_mode<synchronous>, transform_indices = @transform_4, window_bounds = array<i64: 16, 16>}, {pipeline_mode = #tpu.pipeline_mode<synchronous>, transform_indices = @transform_5, window_bounds = array<i64: 16, 72>}, {pipeline_mode = #tpu.pipeline_mode<synchronous>, transform_indices = @transform_6, window_bounds = array<i64: 16, 1>}, {pipeline_mode = #tpu.pipeline_mode<synchronous>, transform_indices = @transform_7, window_bounds = array<i64: 16, 1>}, {pipeline_mode = #tpu.pipeline_mode<synchronous>, transform_indices = @transform_8, window_bounds = array<i64: 16, 1>}, {pipeline_mode = #tpu.pipeline_mode<synchronous>, transform_indices = @transform_9, window_bounds = array<i64: 16, 144>}, {pipeline_mode = #tpu.pipeline_mode<synchronous>, transform_indices = @transform_10, window_bounds = array<i64: 16, 1>}, {pipeline_mode = #tpu.pipeline_mode<synchronous>, transform_indices = @transform_11, window_bounds = array<i64: 16, 1>}, {pipeline_mode = #tpu.pipeline_mode<synchronous>, transform_indices = @transform_12, window_bounds = array<i64: 16, 1>}, {pipeline_mode = #tpu.pipeline_mode<synchronous>, transform_indices = @transform_13, window_bounds = array<i64: 16, 8>}, {pipeline_mode = #tpu.pipeline_mode<synchronous>, transform_indices = @transform_14, window_bounds = array<i64: 16, 1>}, {transform_indices = @transform_15, window_bounds = array<i64: 1, 16, 256>}]} {
    %c0 = arith.constant 0 : index
    %c0_0 = arith.constant 0 : index
    %c0_1 = arith.constant 0 : index
    %0 = vector.load %arg1[%c0, %c0_0, %c0_1] : memref<1x8x256xf32, #tpu.memory_space<vmem>>, vector<1x8x256xf32>
    %1 = vector.shape_cast %0 : vector<1x8x256xf32> to vector<8x256xf32>
    %c0_2 = arith.constant 0 : index
    %c0_3 = arith.constant 0 : index
    %2 = vector.load %arg6[%c0_2, %c0_3] : memref<16x72xf32, #tpu.memory_space<vmem>>, vector<16x72xf32>
    %c17_i32 = arith.constant 17 : i32
    %3 = tpu.dynamic_rotate %1 by %c17_i32 dim 1 : vector<8x256xf32>, i32 -> vector<8x256xf32>
    %c0_4 = arith.constant 0 : index
    %c0_5 = arith.constant 0 : index
    %c0_6 = arith.constant 0 : index
    %4 = vector.load %arg4[%c0_4, %c0_5, %c0_6] : memref<9x1x256xf32, #tpu.memory_space<vmem>>, vector<1x1x256xf32>
    %5 = vector.shape_cast %4 : vector<1x1x256xf32> to vector<1x256xf32>
    %6 = vector.broadcast %5 : vector<1x256xf32> to vector<8x256xf32>
    %7 = arith.mulf %3, %6 : vector<8x256xf32>
    %c16_i32 = arith.constant 16 : i32
    %8 = tpu.dynamic_rotate %1 by %c16_i32 dim 1 : vector<8x256xf32>, i32 -> vector<8x256xf32>
    %c1 = arith.constant 1 : index
    %c0_7 = arith.constant 0 : index
    %c0_8 = arith.constant 0 : index
    %9 = vector.load %arg4[%c1, %c0_7, %c0_8] : memref<9x1x256xf32, #tpu.memory_space<vmem>>, vector<1x1x256xf32>
    %10 = vector.shape_cast %9 : vector<1x1x256xf32> to vector<1x256xf32>
    %11 = vector.broadcast %10 : vector<1x256xf32> to vector<8x256xf32>
    %12 = arith.mulf %8, %11 : vector<8x256xf32>
    %c15_i32 = arith.constant 15 : i32
    %13 = tpu.dynamic_rotate %1 by %c15_i32 dim 1 : vector<8x256xf32>, i32 -> vector<8x256xf32>
    %c2 = arith.constant 2 : index
    %c0_9 = arith.constant 0 : index
    %c0_10 = arith.constant 0 : index
    %14 = vector.load %arg4[%c2, %c0_9, %c0_10] : memref<9x1x256xf32, #tpu.memory_space<vmem>>, vector<1x1x256xf32>
    %15 = vector.shape_cast %14 : vector<1x1x256xf32> to vector<1x256xf32>
    %16 = vector.broadcast %15 : vector<1x256xf32> to vector<8x256xf32>
    %17 = arith.mulf %13, %16 : vector<8x256xf32>
    %c1_i32 = arith.constant 1 : i32
    %18 = tpu.dynamic_rotate %1 by %c1_i32 dim 1 : vector<8x256xf32>, i32 -> vector<8x256xf32>
    %c3 = arith.constant 3 : index
    %c0_11 = arith.constant 0 : index
    %c0_12 = arith.constant 0 : index
    %19 = vector.load %arg4[%c3, %c0_11, %c0_12] : memref<9x1x256xf32, #tpu.memory_space<vmem>>, vector<1x1x256xf32>
    %20 = vector.shape_cast %19 : vector<1x1x256xf32> to vector<1x256xf32>
    %21 = vector.broadcast %20 : vector<1x256xf32> to vector<8x256xf32>
    %22 = arith.mulf %18, %21 : vector<8x256xf32>
    %c255_i32 = arith.constant 255 : i32
    %23 = tpu.dynamic_rotate %1 by %c255_i32 dim 1 : vector<8x256xf32>, i32 -> vector<8x256xf32>
    %c5 = arith.constant 5 : index
    %c0_13 = arith.constant 0 : index
    %c0_14 = arith.constant 0 : index
    %24 = vector.load %arg4[%c5, %c0_13, %c0_14] : memref<9x1x256xf32, #tpu.memory_space<vmem>>, vector<1x1x256xf32>
    %25 = vector.shape_cast %24 : vector<1x1x256xf32> to vector<1x256xf32>
    %26 = vector.broadcast %25 : vector<1x256xf32> to vector<8x256xf32>
    %27 = arith.mulf %23, %26 : vector<8x256xf32>
    %c241_i32 = arith.constant 241 : i32
    %28 = tpu.dynamic_rotate %1 by %c241_i32 dim 1 : vector<8x256xf32>, i32 -> vector<8x256xf32>
    %c6 = arith.constant 6 : index
    %c0_15 = arith.constant 0 : index
    %c0_16 = arith.constant 0 : index
    %29 = vector.load %arg4[%c6, %c0_15, %c0_16] : memref<9x1x256xf32, #tpu.memory_space<vmem>>, vector<1x1x256xf32>
    %30 = vector.shape_cast %29 : vector<1x1x256xf32> to vector<1x256xf32>
    %31 = vector.broadcast %30 : vector<1x256xf32> to vector<8x256xf32>
    %32 = arith.mulf %28, %31 : vector<8x256xf32>
    %c240_i32 = arith.constant 240 : i32
    %33 = tpu.dynamic_rotate %1 by %c240_i32 dim 1 : vector<8x256xf32>, i32 -> vector<8x256xf32>
    %c7 = arith.constant 7 : index
    %c0_17 = arith.constant 0 : index
    %c0_18 = arith.constant 0 : index
    %34 = vector.load %arg4[%c7, %c0_17, %c0_18] : memref<9x1x256xf32, #tpu.memory_space<vmem>>, vector<1x1x256xf32>
    %35 = vector.shape_cast %34 : vector<1x1x256xf32> to vector<1x256xf32>
    %36 = vector.broadcast %35 : vector<1x256xf32> to vector<8x256xf32>
    %37 = arith.mulf %33, %36 : vector<8x256xf32>
    %c239_i32 = arith.constant 239 : i32
    %38 = tpu.dynamic_rotate %1 by %c239_i32 dim 1 : vector<8x256xf32>, i32 -> vector<8x256xf32>
    %c8 = arith.constant 8 : index
    %c0_19 = arith.constant 0 : index
    %c0_20 = arith.constant 0 : index
    %39 = vector.load %arg4[%c8, %c0_19, %c0_20] : memref<9x1x256xf32, #tpu.memory_space<vmem>>, vector<1x1x256xf32>
    %40 = vector.shape_cast %39 : vector<1x1x256xf32> to vector<1x256xf32>
    %41 = vector.broadcast %40 : vector<1x256xf32> to vector<8x256xf32>
    %42 = arith.mulf %38, %41 : vector<8x256xf32>
    %43 = tpu.concatenate %7, %12, %17, %22, %1, %27, %32, %37, %42 in 0 : vector<8x256xf32>, vector<8x256xf32>, vector<8x256xf32>, vector<8x256xf32>, vector<8x256xf32>, vector<8x256xf32>, vector<8x256xf32>, vector<8x256xf32>, vector<8x256xf32> -> vector<72x256xf32>
    %cst = arith.constant dense<0.000000e+00> : vector<16x256xf32>
    %44 = tpu.matmul %2, %43, %cst {dimension_numbers = #tpu.dot_dimension_numbers<[1], [0], [0], [1], [0, 0, 1, 1], [], []>} : vector<16x72xf32>, vector<72x256xf32>, vector<16x256xf32> -> vector<16x256xf32>
    %c0_21 = arith.constant 0 : index
    %c0_22 = arith.constant 0 : index
    %45 = vector.load %arg7[%c0_21, %c0_22] : memref<16x1xf32, #tpu.memory_space<vmem>>, vector<16x1xf32>
    %c0_23 = arith.constant 0 : index
    %c0_24 = arith.constant 0 : index
    %46 = vector.load %arg8[%c0_23, %c0_24] : memref<16x1xf32, #tpu.memory_space<vmem>>, vector<16x1xf32>
    %c0_25 = arith.constant 0 : index
    %c0_26 = arith.constant 0 : index
    %47 = vector.load %arg9[%c0_25, %c0_26] : memref<16x1xf32, #tpu.memory_space<vmem>>, vector<16x1xf32>
    %c0_27 = arith.constant 0 : index
    %c0_28 = arith.constant 0 : index
    %c0_29 = arith.constant 0 : index
    %48 = vector.load %arg2[%c0_27, %c0_28, %c0_29] : memref<1x16x1xf32, #tpu.memory_space<vmem>>, vector<1x16x1xf32>
    %49 = vector.shape_cast %48 : vector<1x16x1xf32> to vector<16x1xf32>
    %c0_30 = arith.constant 0 : index
    %c0_31 = arith.constant 0 : index
    %c0_32 = arith.constant 0 : index
    %50 = vector.load %arg3[%c0_30, %c0_31, %c0_32] : memref<1x16x1xf32, #tpu.memory_space<vmem>>, vector<1x16x1xf32>
    %51 = vector.shape_cast %50 : vector<1x16x1xf32> to vector<16x1xf32>
    %cst_33 = arith.constant dense<0.000000e+00> : vector<16xf32>
    %52 = vector.multi_reduction <add>, %44, %cst_33 [1] : vector<16x256xf32> to vector<16xf32>
    %53 = vector.shape_cast %52 : vector<16xf32> to vector<16x1xf32>
    %54 = arith.mulf %44, %44 : vector<16x256xf32>
    %cst_34 = arith.constant dense<0.000000e+00> : vector<16xf32>
    %55 = vector.multi_reduction <add>, %54, %cst_34 [1] : vector<16x256xf32> to vector<16xf32>
    %56 = vector.shape_cast %55 : vector<16xf32> to vector<16x1xf32>
    %cst_35 = arith.constant 2.560000e+02 : f32
    %57 = vector.broadcast %cst_35 : f32 to vector<16x1xf32>
    %58 = arith.mulf %57, %45 : vector<16x1xf32>
    %59 = arith.addf %53, %58 : vector<16x1xf32>
    %cst_36 = arith.constant 2.000000e+00 : f32
    %60 = vector.broadcast %cst_36 : f32 to vector<16x1xf32>
    %61 = arith.mulf %60, %45 : vector<16x1xf32>
    %62 = arith.mulf %61, %53 : vector<16x1xf32>
    %63 = arith.addf %56, %62 : vector<16x1xf32>
    %cst_37 = arith.constant 2.560000e+02 : f32
    %64 = vector.broadcast %cst_37 : f32 to vector<16x1xf32>
    %65 = arith.mulf %64, %45 : vector<16x1xf32>
    %66 = arith.mulf %65, %45 : vector<16x1xf32>
    %67 = arith.addf %63, %66 : vector<16x1xf32>
    %c0_38 = arith.constant 0 : index
    %c0_39 = arith.constant 0 : index
    %68 = vector.load %arg5[%c0_38, %c0_39] : memref<16x16xf32, #tpu.memory_space<vmem>>, vector<16x16xf32>
    %69 = tpu.concatenate %59, %67 in 1 : vector<16x1xf32>, vector<16x1xf32> -> vector<16x2xf32>
    %cst_40 = arith.constant dense<0.000000e+00> : vector<16x2xf32>
    %70 = tpu.matmul %68, %69, %cst_40 {dimension_numbers = #tpu.dot_dimension_numbers<[1], [0], [0], [1], [0, 0, 1, 1], [], []>} : vector<16x16xf32>, vector<16x2xf32>, vector<16x2xf32> -> vector<16x2xf32>
    %71 = vector.extract_strided_slice %70 {offsets = [0, 0], sizes = [16, 1], strides = [1, 1]} : vector<16x2xf32> to vector<16x1xf32>
    %72 = vector.extract_strided_slice %70 {offsets = [0, 1], sizes = [16, 1], strides = [1, 1]} : vector<16x2xf32> to vector<16x1xf32>
    %73 = arith.mulf %71, %71 : vector<16x1xf32>
    %74 = arith.subf %72, %73 : vector<16x1xf32>
    %cst_41 = arith.constant 9.99999974E-6 : f32
    %75 = vector.broadcast %cst_41 : f32 to vector<16x1xf32>
    %76 = arith.addf %74, %75 : vector<16x1xf32>
    %77 = math.rsqrt %76 : vector<16x1xf32>
    %78 = arith.mulf %77, %46 : vector<16x1xf32>
    %79 = arith.subf %45, %71 : vector<16x1xf32>
    %80 = arith.mulf %79, %78 : vector<16x1xf32>
    %81 = arith.addf %80, %47 : vector<16x1xf32>
    %cst_42 = arith.constant 1.000000e+00 : f32
    %82 = vector.broadcast %cst_42 : f32 to vector<16x1xf32>
    %83 = arith.addf %49, %82 : vector<16x1xf32>
    %84 = arith.mulf %78, %83 : vector<16x1xf32>
    %cst_43 = arith.constant 1.000000e+00 : f32
    %85 = vector.broadcast %cst_43 : f32 to vector<16x1xf32>
    %86 = arith.addf %49, %85 : vector<16x1xf32>
    %87 = arith.mulf %81, %86 : vector<16x1xf32>
    %88 = arith.addf %87, %51 : vector<16x1xf32>
    %89 = vector.broadcast %84 : vector<16x1xf32> to vector<16x256xf32>
    %90 = arith.mulf %44, %89 : vector<16x256xf32>
    %91 = vector.broadcast %88 : vector<16x1xf32> to vector<16x256xf32>
    %92 = arith.addf %90, %91 : vector<16x256xf32>
    %93 = arith.negf %92 : vector<16x256xf32>
    %94 = math.exp %93 : vector<16x256xf32>
    %cst_44 = arith.constant 1.000000e+00 : f32
    %95 = vector.broadcast %cst_44 : f32 to vector<16x256xf32>
    %96 = arith.addf %95, %94 : vector<16x256xf32>
    %97 = arith.divf %95, %96 : vector<16x256xf32>
    %98 = arith.mulf %92, %97 : vector<16x256xf32>
    %c0_45 = arith.constant 0 : index
    %c0_46 = arith.constant 0 : index
    %99 = vector.load %arg10[%c0_45, %c0_46] : memref<16x144xf32, #tpu.memory_space<vmem>>, vector<16x144xf32>
    %c17_i32_47 = arith.constant 17 : i32
    %100 = tpu.dynamic_rotate %98 by %c17_i32_47 dim 1 : vector<16x256xf32>, i32 -> vector<16x256xf32>
    %c0_48 = arith.constant 0 : index
    %c0_49 = arith.constant 0 : index
    %c0_50 = arith.constant 0 : index
    %101 = vector.load %arg4[%c0_48, %c0_49, %c0_50] : memref<9x1x256xf32, #tpu.memory_space<vmem>>, vector<1x1x256xf32>
    %102 = vector.shape_cast %101 : vector<1x1x256xf32> to vector<1x256xf32>
    %103 = vector.broadcast %102 : vector<1x256xf32> to vector<16x256xf32>
    %104 = arith.mulf %100, %103 : vector<16x256xf32>
    %c16_i32_51 = arith.constant 16 : i32
    %105 = tpu.dynamic_rotate %98 by %c16_i32_51 dim 1 : vector<16x256xf32>, i32 -> vector<16x256xf32>
    %c1_52 = arith.constant 1 : index
    %c0_53 = arith.constant 0 : index
    %c0_54 = arith.constant 0 : index
    %106 = vector.load %arg4[%c1_52, %c0_53, %c0_54] : memref<9x1x256xf32, #tpu.memory_space<vmem>>, vector<1x1x256xf32>
    %107 = vector.shape_cast %106 : vector<1x1x256xf32> to vector<1x256xf32>
    %108 = vector.broadcast %107 : vector<1x256xf32> to vector<16x256xf32>
    %109 = arith.mulf %105, %108 : vector<16x256xf32>
    %c15_i32_55 = arith.constant 15 : i32
    %110 = tpu.dynamic_rotate %98 by %c15_i32_55 dim 1 : vector<16x256xf32>, i32 -> vector<16x256xf32>
    %c2_56 = arith.constant 2 : index
    %c0_57 = arith.constant 0 : index
    %c0_58 = arith.constant 0 : index
    %111 = vector.load %arg4[%c2_56, %c0_57, %c0_58] : memref<9x1x256xf32, #tpu.memory_space<vmem>>, vector<1x1x256xf32>
    %112 = vector.shape_cast %111 : vector<1x1x256xf32> to vector<1x256xf32>
    %113 = vector.broadcast %112 : vector<1x256xf32> to vector<16x256xf32>
    %114 = arith.mulf %110, %113 : vector<16x256xf32>
    %c1_i32_59 = arith.constant 1 : i32
    %115 = tpu.dynamic_rotate %98 by %c1_i32_59 dim 1 : vector<16x256xf32>, i32 -> vector<16x256xf32>
    %c3_60 = arith.constant 3 : index
    %c0_61 = arith.constant 0 : index
    %c0_62 = arith.constant 0 : index
    %116 = vector.load %arg4[%c3_60, %c0_61, %c0_62] : memref<9x1x256xf32, #tpu.memory_space<vmem>>, vector<1x1x256xf32>
    %117 = vector.shape_cast %116 : vector<1x1x256xf32> to vector<1x256xf32>
    %118 = vector.broadcast %117 : vector<1x256xf32> to vector<16x256xf32>
    %119 = arith.mulf %115, %118 : vector<16x256xf32>
    %c255_i32_63 = arith.constant 255 : i32
    %120 = tpu.dynamic_rotate %98 by %c255_i32_63 dim 1 : vector<16x256xf32>, i32 -> vector<16x256xf32>
    %c5_64 = arith.constant 5 : index
    %c0_65 = arith.constant 0 : index
    %c0_66 = arith.constant 0 : index
    %121 = vector.load %arg4[%c5_64, %c0_65, %c0_66] : memref<9x1x256xf32, #tpu.memory_space<vmem>>, vector<1x1x256xf32>
    %122 = vector.shape_cast %121 : vector<1x1x256xf32> to vector<1x256xf32>
    %123 = vector.broadcast %122 : vector<1x256xf32> to vector<16x256xf32>
    %124 = arith.mulf %120, %123 : vector<16x256xf32>
    %c241_i32_67 = arith.constant 241 : i32
    %125 = tpu.dynamic_rotate %98 by %c241_i32_67 dim 1 : vector<16x256xf32>, i32 -> vector<16x256xf32>
    %c6_68 = arith.constant 6 : index
    %c0_69 = arith.constant 0 : index
    %c0_70 = arith.constant 0 : index
    %126 = vector.load %arg4[%c6_68, %c0_69, %c0_70] : memref<9x1x256xf32, #tpu.memory_space<vmem>>, vector<1x1x256xf32>
    %127 = vector.shape_cast %126 : vector<1x1x256xf32> to vector<1x256xf32>
    %128 = vector.broadcast %127 : vector<1x256xf32> to vector<16x256xf32>
    %129 = arith.mulf %125, %128 : vector<16x256xf32>
    %c240_i32_71 = arith.constant 240 : i32
    %130 = tpu.dynamic_rotate %98 by %c240_i32_71 dim 1 : vector<16x256xf32>, i32 -> vector<16x256xf32>
    %c7_72 = arith.constant 7 : index
    %c0_73 = arith.constant 0 : index
    %c0_74 = arith.constant 0 : index
    %131 = vector.load %arg4[%c7_72, %c0_73, %c0_74] : memref<9x1x256xf32, #tpu.memory_space<vmem>>, vector<1x1x256xf32>
    %132 = vector.shape_cast %131 : vector<1x1x256xf32> to vector<1x256xf32>
    %133 = vector.broadcast %132 : vector<1x256xf32> to vector<16x256xf32>
    %134 = arith.mulf %130, %133 : vector<16x256xf32>
    %c239_i32_75 = arith.constant 239 : i32
    %135 = tpu.dynamic_rotate %98 by %c239_i32_75 dim 1 : vector<16x256xf32>, i32 -> vector<16x256xf32>
    %c8_76 = arith.constant 8 : index
    %c0_77 = arith.constant 0 : index
    %c0_78 = arith.constant 0 : index
    %136 = vector.load %arg4[%c8_76, %c0_77, %c0_78] : memref<9x1x256xf32, #tpu.memory_space<vmem>>, vector<1x1x256xf32>
    %137 = vector.shape_cast %136 : vector<1x1x256xf32> to vector<1x256xf32>
    %138 = vector.broadcast %137 : vector<1x256xf32> to vector<16x256xf32>
    %139 = arith.mulf %135, %138 : vector<16x256xf32>
    %140 = tpu.concatenate %104, %109, %114, %119, %98, %124, %129, %134, %139 in 0 : vector<16x256xf32>, vector<16x256xf32>, vector<16x256xf32>, vector<16x256xf32>, vector<16x256xf32>, vector<16x256xf32>, vector<16x256xf32>, vector<16x256xf32>, vector<16x256xf32> -> vector<144x256xf32>
    %cst_79 = arith.constant dense<0.000000e+00> : vector<16x256xf32>
    %141 = tpu.matmul %99, %140, %cst_79 {dimension_numbers = #tpu.dot_dimension_numbers<[1], [0], [0], [1], [0, 0, 1, 1], [], []>} : vector<16x144xf32>, vector<144x256xf32>, vector<16x256xf32> -> vector<16x256xf32>
    %c0_80 = arith.constant 0 : index
    %c0_81 = arith.constant 0 : index
    %142 = vector.load %arg11[%c0_80, %c0_81] : memref<16x1xf32, #tpu.memory_space<vmem>>, vector<16x1xf32>
    %c0_82 = arith.constant 0 : index
    %c0_83 = arith.constant 0 : index
    %143 = vector.load %arg12[%c0_82, %c0_83] : memref<16x1xf32, #tpu.memory_space<vmem>>, vector<16x1xf32>
    %c0_84 = arith.constant 0 : index
    %c0_85 = arith.constant 0 : index
    %144 = vector.load %arg13[%c0_84, %c0_85] : memref<16x1xf32, #tpu.memory_space<vmem>>, vector<16x1xf32>
    %cst_86 = arith.constant dense<0.000000e+00> : vector<16xf32>
    %145 = vector.multi_reduction <add>, %141, %cst_86 [1] : vector<16x256xf32> to vector<16xf32>
    %146 = vector.shape_cast %145 : vector<16xf32> to vector<16x1xf32>
    %147 = arith.mulf %141, %141 : vector<16x256xf32>
    %cst_87 = arith.constant dense<0.000000e+00> : vector<16xf32>
    %148 = vector.multi_reduction <add>, %147, %cst_87 [1] : vector<16x256xf32> to vector<16xf32>
    %149 = vector.shape_cast %148 : vector<16xf32> to vector<16x1xf32>
    %cst_88 = arith.constant 2.560000e+02 : f32
    %150 = vector.broadcast %cst_88 : f32 to vector<16x1xf32>
    %151 = arith.mulf %150, %142 : vector<16x1xf32>
    %152 = arith.addf %146, %151 : vector<16x1xf32>
    %cst_89 = arith.constant 2.000000e+00 : f32
    %153 = vector.broadcast %cst_89 : f32 to vector<16x1xf32>
    %154 = arith.mulf %153, %142 : vector<16x1xf32>
    %155 = arith.mulf %154, %146 : vector<16x1xf32>
    %156 = arith.addf %149, %155 : vector<16x1xf32>
    %cst_90 = arith.constant 2.560000e+02 : f32
    %157 = vector.broadcast %cst_90 : f32 to vector<16x1xf32>
    %158 = arith.mulf %157, %142 : vector<16x1xf32>
    %159 = arith.mulf %158, %142 : vector<16x1xf32>
    %160 = arith.addf %156, %159 : vector<16x1xf32>
    %c0_91 = arith.constant 0 : index
    %c0_92 = arith.constant 0 : index
    %161 = vector.load %arg5[%c0_91, %c0_92] : memref<16x16xf32, #tpu.memory_space<vmem>>, vector<16x16xf32>
    %162 = tpu.concatenate %152, %160 in 1 : vector<16x1xf32>, vector<16x1xf32> -> vector<16x2xf32>
    %cst_93 = arith.constant dense<0.000000e+00> : vector<16x2xf32>
    %163 = tpu.matmul %161, %162, %cst_93 {dimension_numbers = #tpu.dot_dimension_numbers<[1], [0], [0], [1], [0, 0, 1, 1], [], []>} : vector<16x16xf32>, vector<16x2xf32>, vector<16x2xf32> -> vector<16x2xf32>
    %164 = vector.extract_strided_slice %163 {offsets = [0, 0], sizes = [16, 1], strides = [1, 1]} : vector<16x2xf32> to vector<16x1xf32>
    %165 = vector.extract_strided_slice %163 {offsets = [0, 1], sizes = [16, 1], strides = [1, 1]} : vector<16x2xf32> to vector<16x1xf32>
    %166 = arith.mulf %164, %164 : vector<16x1xf32>
    %167 = arith.subf %165, %166 : vector<16x1xf32>
    %cst_94 = arith.constant 9.99999974E-6 : f32
    %168 = vector.broadcast %cst_94 : f32 to vector<16x1xf32>
    %169 = arith.addf %167, %168 : vector<16x1xf32>
    %170 = math.rsqrt %169 : vector<16x1xf32>
    %171 = arith.mulf %170, %143 : vector<16x1xf32>
    %172 = arith.subf %142, %164 : vector<16x1xf32>
    %173 = arith.mulf %172, %171 : vector<16x1xf32>
    %174 = arith.addf %173, %144 : vector<16x1xf32>
    %175 = vector.broadcast %171 : vector<16x1xf32> to vector<16x256xf32>
    %176 = arith.mulf %141, %175 : vector<16x256xf32>
    %177 = vector.broadcast %174 : vector<16x1xf32> to vector<16x256xf32>
    %178 = arith.addf %176, %177 : vector<16x256xf32>
    %179 = arith.negf %178 : vector<16x256xf32>
    %180 = math.exp %179 : vector<16x256xf32>
    %cst_95 = arith.constant 1.000000e+00 : f32
    %181 = vector.broadcast %cst_95 : f32 to vector<16x256xf32>
    %182 = arith.addf %181, %180 : vector<16x256xf32>
    %183 = arith.divf %181, %182 : vector<16x256xf32>
    %184 = arith.mulf %178, %183 : vector<16x256xf32>
    %c0_96 = arith.constant 0 : index
    %c0_97 = arith.constant 0 : index
    %185 = vector.load %arg14[%c0_96, %c0_97] : memref<16x8xf32, #tpu.memory_space<vmem>>, vector<16x8xf32>
    %cst_98 = arith.constant dense<0.000000e+00> : vector<16x256xf32>
    %186 = tpu.matmul %185, %1, %cst_98 {dimension_numbers = #tpu.dot_dimension_numbers<[1], [0], [0], [1], [0, 0, 1, 1], [], []>} : vector<16x8xf32>, vector<8x256xf32>, vector<16x256xf32> -> vector<16x256xf32>
    %c0_99 = arith.constant 0 : index
    %c0_100 = arith.constant 0 : index
    %187 = vector.load %arg15[%c0_99, %c0_100] : memref<16x1xf32, #tpu.memory_space<vmem>>, vector<16x1xf32>
    %188 = vector.broadcast %187 : vector<16x1xf32> to vector<16x256xf32>
    %189 = arith.addf %186, %188 : vector<16x256xf32>
    %190 = arith.addf %184, %189 : vector<16x256xf32>
    %c0_101 = arith.constant 0 : index
    %c0_102 = arith.constant 0 : index
    %c0_103 = arith.constant 0 : index
    %191 = vector.load %arg16[%c0_101, %c0_102, %c0_103] : memref<1x16x256xf32, #tpu.memory_space<vmem>>, vector<1x16x256xf32>
    %192 = vector.shape_cast %191 : vector<1x16x256xf32> to vector<16x256xf32>
    %193 = vector.shape_cast %190 : vector<16x256xf32> to vector<1x16x256xf32>
    tpu.vector_store %arg16[%c0_101, %c0_102, %c0_103], %193 {strides = array<i32>} : memref<1x16x256xf32, #tpu.memory_space<vmem>>, vector<1x16x256xf32>,
    return
  }
  func.func @transform_0(%arg0: i32) -> (i32, i32, i32) {
    %c0_i32 = arith.constant 0 : i32
    %c0_i32_0 = arith.constant 0 : i32
    %c0_i32_1 = arith.constant 0 : i32
    return %arg0, %c0_i32, %c0_i32_0 : i32, i32, i32
  }
  func.func @transform_1(%arg0: i32) -> (i32, i32, i32) {
    %c0_i32 = arith.constant 0 : i32
    %c0_i32_0 = arith.constant 0 : i32
    %c0_i32_1 = arith.constant 0 : i32
    return %arg0, %c0_i32, %c0_i32_0 : i32, i32, i32
  }
  func.func @transform_2(%arg0: i32) -> (i32, i32, i32) {
    %c0_i32 = arith.constant 0 : i32
    %c0_i32_0 = arith.constant 0 : i32
    %c0_i32_1 = arith.constant 0 : i32
    return %arg0, %c0_i32, %c0_i32_0 : i32, i32, i32
  }
  func.func @transform_3(%arg0: i32) -> (i32, i32, i32) {
    %c0_i32 = arith.constant 0 : i32
    %c0_i32_0 = arith.constant 0 : i32
    %c0_i32_1 = arith.constant 0 : i32
    %c0_i32_2 = arith.constant 0 : i32
    return %c0_i32, %c0_i32_0, %c0_i32_1 : i32, i32, i32
  }
  func.func @transform_4(%arg0: i32) -> (i32, i32) {
    %c0_i32 = arith.constant 0 : i32
    %c0_i32_0 = arith.constant 0 : i32
    %c0_i32_1 = arith.constant 0 : i32
    return %c0_i32, %c0_i32_0 : i32, i32
  }
  func.func @transform_5(%arg0: i32) -> (i32, i32) {
    %c0_i32 = arith.constant 0 : i32
    %c0_i32_0 = arith.constant 0 : i32
    %c0_i32_1 = arith.constant 0 : i32
    return %c0_i32, %c0_i32_0 : i32, i32
  }
  func.func @transform_6(%arg0: i32) -> (i32, i32) {
    %c0_i32 = arith.constant 0 : i32
    %c0_i32_0 = arith.constant 0 : i32
    %c0_i32_1 = arith.constant 0 : i32
    return %c0_i32, %c0_i32_0 : i32, i32
  }
  func.func @transform_7(%arg0: i32) -> (i32, i32) {
    %c0_i32 = arith.constant 0 : i32
    %c0_i32_0 = arith.constant 0 : i32
    %c0_i32_1 = arith.constant 0 : i32
    return %c0_i32, %c0_i32_0 : i32, i32
  }
  func.func @transform_8(%arg0: i32) -> (i32, i32) {
    %c0_i32 = arith.constant 0 : i32
    %c0_i32_0 = arith.constant 0 : i32
    %c0_i32_1 = arith.constant 0 : i32
    return %c0_i32, %c0_i32_0 : i32, i32
  }
  func.func @transform_9(%arg0: i32) -> (i32, i32) {
    %c0_i32 = arith.constant 0 : i32
    %c0_i32_0 = arith.constant 0 : i32
    %c0_i32_1 = arith.constant 0 : i32
    return %c0_i32, %c0_i32_0 : i32, i32
  }
  func.func @transform_10(%arg0: i32) -> (i32, i32) {
    %c0_i32 = arith.constant 0 : i32
    %c0_i32_0 = arith.constant 0 : i32
    %c0_i32_1 = arith.constant 0 : i32
    return %c0_i32, %c0_i32_0 : i32, i32
  }
  func.func @transform_11(%arg0: i32) -> (i32, i32) {
    %c0_i32 = arith.constant 0 : i32
    %c0_i32_0 = arith.constant 0 : i32
    %c0_i32_1 = arith.constant 0 : i32
    return %c0_i32, %c0_i32_0 : i32, i32
  }
  func.func @transform_12(%arg0: i32) -> (i32, i32) {
    %c0_i32 = arith.constant 0 : i32
    %c0_i32_0 = arith.constant 0 : i32
    %c0_i32_1 = arith.constant 0 : i32
    return %c0_i32, %c0_i32_0 : i32, i32
  }
  func.func @transform_13(%arg0: i32) -> (i32, i32) {
    %c0_i32 = arith.constant 0 : i32
    %c0_i32_0 = arith.constant 0 : i32
    %c0_i32_1 = arith.constant 0 : i32
    return %c0_i32, %c0_i32_0 : i32, i32
  }
  func.func @transform_14(%arg0: i32) -> (i32, i32) {
    %c0_i32 = arith.constant 0 : i32
    %c0_i32_0 = arith.constant 0 : i32
    %c0_i32_1 = arith.constant 0 : i32
    return %c0_i32, %c0_i32_0 : i32, i32
  }
  func.func @transform_15(%arg0: i32) -> (i32, i32, i32) {
    %c0_i32 = arith.constant 0 : i32
    %c0_i32_0 = arith.constant 0 : i32
    %c0_i32_1 = arith.constant 0 : i32
    return %arg0, %c0_i32, %c0_i32_0 : i32, i32, i32
  }
}

</mosaic_0001>

<llo_original>
// kernel: tpu_custom_call.1
$region0: #{tpu_custom_call.1}
  #allocation0 [shape = 'u32[]', space=smem, size = 0x4, offset = 0x4, fixed_abs, tag = 'smem constant byte address 0x4 - core index']
  #allocation1 [shape = 'u32[144,128]{1,0:T(1,128)}', space=vmem, size = 0x12000, scoped, tag = 'internal scratch']
  %s0 = inlined_call_operand.vmem [shape: f32[2,8,256], index: 0, kind: input, shape index: {}]
  %s1 = inlined_call_operand.vmem [shape: f32[2,16,1], index: 1, kind: input, shape index: {}]
  %s2 = inlined_call_operand.vmem [shape: f32[2,16,1], index: 2, kind: input, shape index: {}]
  %s3 = inlined_call_operand.vmem [shape: f32[9,1,256], index: 3, kind: input, shape index: {}]
  %s4 = inlined_call_operand.vmem [shape: f32[16,16], index: 4, kind: input, shape index: {}]
  %s5 = inlined_call_operand.vmem [shape: f32[16,72], index: 5, kind: input, shape index: {}]
  %s6 = inlined_call_operand.vmem [shape: f32[16,1], index: 6, kind: input, shape index: {}]
  %s7 = inlined_call_operand.vmem [shape: f32[16,1], index: 7, kind: input, shape index: {}]
  %s8 = inlined_call_operand.vmem [shape: f32[16,1], index: 8, kind: input, shape index: {}]
  %s9 = inlined_call_operand.vmem [shape: f32[16,144], index: 9, kind: input, shape index: {}]
  %s10 = inlined_call_operand.vmem [shape: f32[16,1], index: 10, kind: input, shape index: {}]
  %s11 = inlined_call_operand.vmem [shape: f32[16,1], index: 11, kind: input, shape index: {}]
  %s12 = inlined_call_operand.vmem [shape: f32[16,1], index: 12, kind: input, shape index: {}]
  %s13 = inlined_call_operand.vmem [shape: f32[16,8], index: 13, kind: input, shape index: {}]
  %s14 = inlined_call_operand.vmem [shape: f32[16,1], index: 14, kind: input, shape index: {}]
  %s15 = inlined_call_operand.hbm [shape: f32[2,16,256], index: 15, kind: output, shape index: {}]
  %s16 = sld [smem:[#allocation0]]
  $region93: #{tpu_custom_call.1} parent=0
    _
  %s18 = ssub.s32 1, %s16
  %s19 = scalar_select 0, %s18, %s16
  $region1: #{tpu_custom_call.1} parent=0
    #allocation2 [shape = 'u8[32768]{0}', space=vmem, size = 0x8000, scoped, tag = 'output window, operand 0']
    #allocation3 [shape = 's32[2]{0}', space=sflag, size = 0x8, scoped, tag = 'scoped memory for tpu_custom_call.1']
    %20 = vsyncpa [#allocation3], 0
    %s21 = scalar_lea.sflag [#allocation3], 1
    %22 = vsyncpa %s21, 0
    loop: start=0, step=1, limit=4
    $region2: #{tpu_custom_call.1} parent=1 // loop_pre_header
      _
    $region3: #{tpu_custom_call.1} parent=1 // loop_header
      %s24 = sphi 0, %s28
      %p25 = scmp.ge.s32.totalorder %s24, 4
      %s34 = sphi 0, %s36
      %s37 = sphi 0, %s34
      %s38 = sphi 0, %s37
      %s54 = sphi 0, %s38
      %s60 = sphi 0, %s62
      %s63 = sphi 0, %s60
      %s64 = sphi 0, %s63
      %s80 = sphi 0, %s64
      %s86 = sphi 0, %s88
      %s89 = sphi 0, %s86
      %s90 = sphi 0, %s89
      %s106 = sphi 0, %s90
      %s110 = sphi 0, %s110
      %s112 = sphi 0, %s110
      %s113 = sphi 0, %s112
      %s127 = sphi 0, %s113
      %s131 = sphi 0, %s131
      %s133 = sphi 0, %s131
      %s134 = sphi 0, %s133
      %s148 = sphi 0, %s134
      %s152 = sphi 0, %s152
      %s154 = sphi 0, %s152
      %s155 = sphi 0, %s154
      %s169 = sphi 0, %s155
      %s173 = sphi 0, %s173
      %s175 = sphi 0, %s173
      %s176 = sphi 0, %s175
      %s190 = sphi 0, %s176
      %s194 = sphi 0, %s194
      %s196 = sphi 0, %s194
      %s197 = sphi 0, %s196
      %s211 = sphi 0, %s197
      %s215 = sphi 0, %s215
      %s217 = sphi 0, %s215
      %s218 = sphi 0, %s217
      %s232 = sphi 0, %s218
      %s236 = sphi 0, %s236
      %s238 = sphi 0, %s236
      %s239 = sphi 0, %s238
      %s253 = sphi 0, %s239
      %s257 = sphi 0, %s257
      %s259 = sphi 0, %s257
      %s260 = sphi 0, %s259
      %s274 = sphi 0, %s260
      %s278 = sphi 0, %s278
      %s280 = sphi 0, %s278
      %s281 = sphi 0, %s280
      %s295 = sphi 0, %s281
      %s299 = sphi 0, %s299
      %s301 = sphi 0, %s299
      %s302 = sphi 0, %s301
      %s316 = sphi 0, %s302
      %s320 = sphi 0, %s320
      %s322 = sphi 0, %s320
      %s323 = sphi 0, %s322
      %s337 = sphi 0, %s323
      %s341 = sphi 0, %s341
      %s343 = sphi 0, %s341
      %s344 = sphi 0, %s343
      %s358 = sphi 0, %s344
      %s364 = sphi 0, %s366
      %s367 = sphi 0, %s364
      %s368 = sphi 0, %s367
      %s384 = sphi 0, %s368
    $region4: #{tpu_custom_call.1} parent=1 // loop_header_branch
      %27 = sbr.rel (%p25) target = $region8
    $region5: #{tpu_custom_call.1} parent=1 // loop_body
      %s29 = ssub.s32 %s24, 1
      %s30 = ssub.s32 %s24, 2
      %s31 = sadd.s32 %s24, 1
      %s32 = ssub.s32 %s24, %s31
      %p33 = scmp.eq.s32.totalorder %s32, 0
      %s35 = sadd.s32 %s34, 1
      %s36 = scalar_select %p33, %s34, %s35
      %p39 = pneg %p33
      %p40 = scmp.eq.s32.totalorder %s24, 1
      %p41 = por %p39, %p40
      %p42 = scmp.ne.s32.totalorder %s34, %s37
      %p43 = scmp.eq.s32.totalorder %s24, 0
      %p44 = por %p42, %p43
      %p45 = scmp.ne.s32.totalorder %s34, %s37
      %p46 = scmp.eq.s32.totalorder %s29, 1
      %p47 = por %p45, %p46
      %p48 = scmp.ne.s32.totalorder %s37, %s38
      %p49 = scmp.eq.s32.totalorder %s29, 0
      %p50 = por %p48, %p49
      %p51 = scmp.ne.s32.totalorder %s37, %s38
      %p52 = scmp.eq.s32.totalorder %s30, 1
      %p53 = por %p51, %p52
      %p55 = scmp.ne.s32.totalorder %s38, %s54
      %p56 = scmp.eq.s32.totalorder %s30, 0
      %p57 = por %p55, %p56
      %s58 = ssub.s32 %s24, %s31
      %p59 = scmp.eq.s32.totalorder %s58, 0
      %s61 = sadd.s32 %s60, 1
      %s62 = scalar_select %p59, %s60, %s61
      %p65 = pneg %p59
      %p66 = scmp.eq.s32.totalorder %s24, 1
      %p67 = por %p65, %p66
      %p68 = scmp.ne.s32.totalorder %s60, %s63
      %p69 = scmp.eq.s32.totalorder %s24, 0
      %p70 = por %p68, %p69
      %p71 = scmp.ne.s32.totalorder %s60, %s63
      %p72 = scmp.eq.s32.totalorder %s29, 1
      %p73 = por %p71, %p72
      %p74 = scmp.ne.s32.totalorder %s63, %s64
      %p75 = scmp.eq.s32.totalorder %s29, 0
      %p76 = por %p74, %p75
      %p77 = scmp.ne.s32.totalorder %s63, %s64
      %p78 = scmp.eq.s32.totalorder %s30, 1
      %p79 = por %p77, %p78
      %p81 = scmp.ne.s32.totalorder %s64, %s80
      %p82 = scmp.eq.s32.totalorder %s30, 0
      %p83 = por %p81, %p82
      %s84 = ssub.s32 %s24, %s31
      %p85 = scmp.eq.s32.totalorder %s84, 0
      %s87 = sadd.s32 %s86, 1
      %s88 = scalar_select %p85, %s86, %s87
      %p91 = pneg %p85
      %p92 = scmp.eq.s32.totalorder %s24, 1
      %p93 = por %p91, %p92
      %p94 = scmp.ne.s32.totalorder %s86, %s89
      %p95 = scmp.eq.s32.totalorder %s24, 0
      %p96 = por %p94, %p95
      %p97 = scmp.ne.s32.totalorder %s86, %s89
      %p98 = scmp.eq.s32.totalorder %s29, 1
      %p99 = por %p97, %p98
      %p100 = scmp.ne.s32.totalorder %s89, %s90
      %p101 = scmp.eq.s32.totalorder %s29, 0
      %p102 = por %p100, %p101
      %p103 = scmp.ne.s32.totalorder %s89, %s90
      %p104 = scmp.eq.s32.totalorder %s30, 1
      %p105 = por %p103, %p104
      %p107 = scmp.ne.s32.totalorder %s90, %s106
      %p108 = scmp.eq.s32.totalorder %s30, 0
      %p109 = por %p107, %p108
      %s111 = sadd.s32 %s110, 1
      %p114 = scmp.eq.s32.totalorder %s24, 1
      %p115 = scmp.ne.s32.totalorder %s110, %s112
      %p116 = scmp.eq.s32.totalorder %s24, 0
      %p117 = por %p115, %p116
      %p118 = scmp.ne.s32.totalorder %s110, %s112
      %p119 = scmp.eq.s32.totalorder %s29, 1
      %p120 = por %p118, %p119
      %p121 = scmp.ne.s32.totalorder %s112, %s113
      %p122 = scmp.eq.s32.totalorder %s29, 0
      %p123 = por %p121, %p122
      %p124 = scmp.ne.s32.totalorder %s112, %s113
      %p125 = scmp.eq.s32.totalorder %s30, 1
      %p126 = por %p124, %p125
      %p128 = scmp.ne.s32.totalorder %s113, %s127
      %p129 = scmp.eq.s32.totalorder %s30, 0
      %p130 = por %p128, %p129
      %s132 = sadd.s32 %s131, 1
      %p135 = scmp.eq.s32.totalorder %s24, 1
      %p136 = scmp.ne.s32.totalorder %s131, %s133
      %p137 = scmp.eq.s32.totalorder %s24, 0
      %p138 = por %p136, %p137
      %p139 = scmp.ne.s32.totalorder %s131, %s133
      %p140 = scmp.eq.s32.totalorder %s29, 1
      %p141 = por %p139, %p140
      %p142 = scmp.ne.s32.totalorder %s133, %s134
      %p143 = scmp.eq.s32.totalorder %s29, 0
      %p144 = por %p142, %p143
      %p145 = scmp.ne.s32.totalorder %s133, %s134
      %p146 = scmp.eq.s32.totalorder %s30, 1
      %p147 = por %p145, %p146
      %p149 = scmp.ne.s32.totalorder %s134, %s148
      %p150 = scmp.eq.s32.totalorder %s30, 0
      %p151 = por %p149, %p150
      %s153 = sadd.s32 %s152, 1
      %p156 = scmp.eq.s32.totalorder %s24, 1
      %p157 = scmp.ne.s32.totalorder %s152, %s154
      %p158 = scmp.eq.s32.totalorder %s24, 0
      %p159 = por %p157, %p158
      %p160 = scmp.ne.s32.totalorder %s152, %s154
      %p161 = scmp.eq.s32.totalorder %s29, 1
      %p162 = por %p160, %p161
      %p163 = scmp.ne.s32.totalorder %s154, %s155
      %p164 = scmp.eq.s32.totalorder %s29, 0
      %p165 = por %p163, %p164
      %p166 = scmp.ne.s32.totalorder %s154, %s155
      %p167 = scmp.eq.s32.totalorder %s30, 1
      %p168 = por %p166, %p167
      %p170 = scmp.ne.s32.totalorder %s155, %s169
      %p171 = scmp.eq.s32.totalorder %s30, 0
      %p172 = por %p170, %p171
      %s174 = sadd.s32 %s173, 1
      %p177 = scmp.eq.s32.totalorder %s24, 1
      %p178 = scmp.ne.s32.totalorder %s173, %s175
      %p179 = scmp.eq.s32.totalorder %s24, 0
      %p180 = por %p178, %p179
      %p181 = scmp.ne.s32.totalorder %s173, %s175
      %p182 = scmp.eq.s32.totalorder %s29, 1
      %p183 = por %p181, %p182
      %p184 = scmp.ne.s32.totalorder %s175, %s176
      %p185 = scmp.eq.s32.totalorder %s29, 0
      %p186 = por %p184, %p185
      %p187 = scmp.ne.s32.totalorder %s175, %s176
      %p188 = scmp.eq.s32.totalorder %s30, 1
      %p189 = por %p187, %p188
      %p191 = scmp.ne.s32.totalorder %s176, %s190
      %p192 = scmp.eq.s32.totalorder %s30, 0
      %p193 = por %p191, %p192
      %s195 = sadd.s32 %s194, 1
      %p198 = scmp.eq.s32.totalorder %s24, 1
      %p199 = scmp.ne.s32.totalorder %s194, %s196
      %p200 = scmp.eq.s32.totalorder %s24, 0
      %p201 = por %p199, %p200
      %p202 = scmp.ne.s32.totalorder %s194, %s196
      %p203 = scmp.eq.s32.totalorder %s29, 1
      %p204 = por %p202, %p203
      %p205 = scmp.ne.s32.totalorder %s196, %s197
      %p206 = scmp.eq.s32.totalorder %s29, 0
      %p207 = por %p205, %p206
      %p208 = scmp.ne.s32.totalorder %s196, %s197
      %p209 = scmp.eq.s32.totalorder %s30, 1
      %p210 = por %p208, %p209
      %p212 = scmp.ne.s32.totalorder %s197, %s211
      %p213 = scmp.eq.s32.totalorder %s30, 0
      %p214 = por %p212, %p213
      %s216 = sadd.s32 %s215, 1
      %p219 = scmp.eq.s32.totalorder %s24, 1
      %p220 = scmp.ne.s32.totalorder %s215, %s217
      %p221 = scmp.eq.s32.totalorder %s24, 0
      %p222 = por %p220, %p221
      %p223 = scmp.ne.s32.totalorder %s215, %s217
      %p224 = scmp.eq.s32.totalorder %s29, 1
      %p225 = por %p223, %p224
      %p226 = scmp.ne.s32.totalorder %s217, %s218
      %p227 = scmp.eq.s32.totalorder %s29, 0
      %p228 = por %p226, %p227
      %p229 = scmp.ne.s32.totalorder %s217, %s218
      %p230 = scmp.eq.s32.totalorder %s30, 1
      %p231 = por %p229, %p230
      %p233 = scmp.ne.s32.totalorder %s218, %s232
      %p234 = scmp.eq.s32.totalorder %s30, 0
      %p235 = por %p233, %p234
      %s237 = sadd.s32 %s236, 1
      %p240 = scmp.eq.s32.totalorder %s24, 1
      %p241 = scmp.ne.s32.totalorder %s236, %s238
      %p242 = scmp.eq.s32.totalorder %s24, 0
      %p243 = por %p241, %p242
      %p244 = scmp.ne.s32.totalorder %s236, %s238
      %p245 = scmp.eq.s32.totalorder %s29, 1
      %p246 = por %p244, %p245
      %p247 = scmp.ne.s32.totalorder %s238, %s239
      %p248 = scmp.eq.s32.totalorder %s29, 0
      %p249 = por %p247, %p248
      %p250 = scmp.ne.s32.totalorder %s238, %s239
      %p251 = scmp.eq.s32.totalorder %s30, 1
      %p252 = por %p250, %p251
      %p254 = scmp.ne.s32.totalorder %s239, %s253
      %p255 = scmp.eq.s32.totalorder %s30, 0
      %p256 = por %p254, %p255
      %s258 = sadd.s32 %s257, 1
      %p261 = scmp.eq.s32.totalorder %s24, 1
      %p262 = scmp.ne.s32.totalorder %s257, %s259
      %p263 = scmp.eq.s32.totalorder %s24, 0
      %p264 = por %p262, %p263
      %p265 = scmp.ne.s32.totalorder %s257, %s259
      %p266 = scmp.eq.s32.totalorder %s29, 1
      %p267 = por %p265, %p266
      %p268 = scmp.ne.s32.totalorder %s259, %s260
      %p269 = scmp.eq.s32.totalorder %s29, 0
      %p270 = por %p268, %p269
      %p271 = scmp.ne.s32.totalorder %s259, %s260
      %p272 = scmp.eq.s32.totalorder %s30, 1
      %p273 = por %p271, %p272
      %p275 = scmp.ne.s32.totalorder %s260, %s274
      %p276 = scmp.eq.s32.totalorder %s30, 0
      %p277 = por %p275, %p276
      %s279 = sadd.s32 %s278, 1
      %p282 = scmp.eq.s32.totalorder %s24, 1
      %p283 = scmp.ne.s32.totalorder %s278, %s280
      %p284 = scmp.eq.s32.totalorder %s24, 0
      %p285 = por %p283, %p284
      %p286 = scmp.ne.s32.totalorder %s278, %s280
      %p287 = scmp.eq.s32.totalorder %s29, 1
      %p288 = por %p286, %p287
      %p289 = scmp.ne.s32.totalorder %s280, %s281
      %p290 = scmp.eq.s32.totalorder %s29, 0
      %p291 = por %p289, %p290
      %p292 = scmp.ne.s32.totalorder %s280, %s281
      %p293 = scmp.eq.s32.totalorder %s30, 1
      %p294 = por %p292, %p293
      %p296 = scmp.ne.s32.totalorder %s281, %s295
      %p297 = scmp.eq.s32.totalorder %s30, 0
      %p298 = por %p296, %p297
      %s300 = sadd.s32 %s299, 1
      %p303 = scmp.eq.s32.totalorder %s24, 1
      %p304 = scmp.ne.s32.totalorder %s299, %s301
      %p305 = scmp.eq.s32.totalorder %s24, 0
      %p306 = por %p304, %p305
      %p307 = scmp.ne.s32.totalorder %s299, %s301
      %p308 = scmp.eq.s32.totalorder %s29, 1
      %p309 = por %p307, %p308
      %p310 = scmp.ne.s32.totalorder %s301, %s302
      %p311 = scmp.eq.s32.totalorder %s29, 0
      %p312 = por %p310, %p311
      %p313 = scmp.ne.s32.totalorder %s301, %s302
      %p314 = scmp.eq.s32.totalorder %s30, 1
      %p315 = por %p313, %p314
      %p317 = scmp.ne.s32.totalorder %s302, %s316
      %p318 = scmp.eq.s32.totalorder %s30, 0
      %p319 = por %p317, %p318
      %s321 = sadd.s32 %s320, 1
      %p324 = scmp.eq.s32.totalorder %s24, 1
      %p325 = scmp.ne.s32.totalorder %s320, %s322
      %p326 = scmp.eq.s32.totalorder %s24, 0
      %p327 = por %p325, %p326
      %p328 = scmp.ne.s32.totalorder %s320, %s322
      %p329 = scmp.eq.s32.totalorder %s29, 1
      %p330 = por %p328, %p329
      %p331 = scmp.ne.s32.totalorder %s322, %s323
      %p332 = scmp.eq.s32.totalorder %s29, 0
      %p333 = por %p331, %p332
      %p334 = scmp.ne.s32.totalorder %s322, %s323
      %p335 = scmp.eq.s32.totalorder %s30, 1
      %p336 = por %p334, %p335
      %p338 = scmp.ne.s32.totalorder %s323, %s337
      %p339 = scmp.eq.s32.totalorder %s30, 0
      %p340 = por %p338, %p339
      %s342 = sadd.s32 %s341, 1
      %p345 = scmp.eq.s32.totalorder %s24, 1
      %p346 = scmp.ne.s32.totalorder %s341, %s343
      %p347 = scmp.eq.s32.totalorder %s24, 0
      %p348 = por %p346, %p347
      %p349 = scmp.ne.s32.totalorder %s341, %s343
      %p350 = scmp.eq.s32.totalorder %s29, 1
      %p351 = por %p349, %p350
      %p352 = scmp.ne.s32.totalorder %s343, %s344
      %p353 = scmp.eq.s32.totalorder %s29, 0
      %p354 = por %p352, %p353
      %p355 = scmp.ne.s32.totalorder %s343, %s344
      %p356 = scmp.eq.s32.totalorder %s30, 1
      %p357 = por %p355, %p356
      %p359 = scmp.ne.s32.totalorder %s344, %s358
      %p360 = scmp.eq.s32.totalorder %s30, 0
      %p361 = por %p359, %p360
      %s362 = ssub.s32 %s24, %s31
      %p363 = scmp.eq.s32.totalorder %s362, 0
      %s365 = sadd.s32 %s364, 1
      %s366 = scalar_select %p363, %s364, %s365
      %p369 = pneg %p363
      %p370 = scmp.eq.s32.totalorder %s24, 1
      %p371 = por %p369, %p370
      %p372 = scmp.ne.s32.totalorder %s364, %s367
      %p373 = scmp.eq.s32.totalorder %s24, 0
      %p374 = por %p372, %p373
      %p375 = scmp.ne.s32.totalorder %s364, %s367
      %p376 = scmp.eq.s32.totalorder %s29, 1
      %p377 = por %p375, %p376
      %p378 = scmp.ne.s32.totalorder %s367, %s368
      %p379 = scmp.eq.s32.totalorder %s29, 0
      %p380 = por %p378, %p379
      %p381 = scmp.ne.s32.totalorder %s367, %s368
      %p382 = scmp.eq.s32.totalorder %s30, 1
      %p383 = por %p381, %p382
      %p385 = scmp.ne.s32.totalorder %s368, %s384
      %p386 = scmp.eq.s32.totalorder %s30, 0
      %p387 = por %p385, %p386
      %p388 = scmp.le.s32.totalorder 1, %s24
      %p389 = scmp.lt.s32.totalorder %s24, 3
      %p390 = pnand %p388, %p389
      %p391 = pneg %p390
      // Predicated region
      $region9: #{tpu_custom_call.1} parent=5 // pred_check
        _
      $region10: #{tpu_custom_call.1} parent=5 // pred_check_branch
        %393 = sbr.rel (%p390) target = $region12
      $region11: #{tpu_custom_call.1} parent=5 // pred_region
        %s394 = ssub.s32 %s24, 1
        // Predicated region
        $region13: #{tpu_custom_call.1} parent=11 // pred_check
          %p395 = pneg %p123
        $region14: #{tpu_custom_call.1} parent=11 // pred_check_branch
          %397 = sbr.rel (%p395) target = $region16
        $region15: #{tpu_custom_call.1} parent=11 // pred_region
          _
        $region16: #{tpu_custom_call.1} parent=11 // pred_fallthru
          _
        // Predicated region
        $region17: #{tpu_custom_call.1} parent=11 // pred_check
          %p398 = pneg %p144
        $region18: #{tpu_custom_call.1} parent=11 // pred_check_branch
          %400 = sbr.rel (%p398) target = $region20
        $region19: #{tpu_custom_call.1} parent=11 // pred_region
          _
        $region20: #{tpu_custom_call.1} parent=11 // pred_fallthru
          _
        // Predicated region
        $region21: #{tpu_custom_call.1} parent=11 // pred_check
          %p401 = pneg %p165
        $region22: #{tpu_custom_call.1} parent=11 // pred_check_branch
          %403 = sbr.rel (%p401) target = $region24
        $region23: #{tpu_custom_call.1} parent=11 // pred_region
          _
        $region24: #{tpu_custom_call.1} parent=11 // pred_fallthru
          _
        // Predicated region
        $region25: #{tpu_custom_call.1} parent=11 // pred_check
          %p404 = pneg %p186
        $region26: #{tpu_custom_call.1} parent=11 // pred_check_branch
          %406 = sbr.rel (%p404) target = $region28
        $region27: #{tpu_custom_call.1} parent=11 // pred_region
          _
        $region28: #{tpu_custom_call.1} parent=11 // pred_fallthru
          _
        // Predicated region
        $region29: #{tpu_custom_call.1} parent=11 // pred_check
          %p407 = pneg %p207
        $region30: #{tpu_custom_call.1} parent=11 // pred_check_branch
          %409 = sbr.rel (%p407) target = $region32
        $region31: #{tpu_custom_call.1} parent=11 // pred_region
          _
        $region32: #{tpu_custom_call.1} parent=11 // pred_fallthru
          _
        // Predicated region
        $region33: #{tpu_custom_call.1} parent=11 // pred_check
          %p410 = pneg %p228
        $region34: #{tpu_custom_call.1} parent=11 // pred_check_branch
          %412 = sbr.rel (%p410) target = $region36
        $region35: #{tpu_custom_call.1} parent=11 // pred_region
          _
        $region36: #{tpu_custom_call.1} parent=11 // pred_fallthru
          _
        // Predicated region
        $region37: #{tpu_custom_call.1} parent=11 // pred_check
          %p413 = pneg %p249
        $region38: #{tpu_custom_call.1} parent=11 // pred_check_branch
          %415 = sbr.rel (%p413) target = $region40
        $region39: #{tpu_custom_call.1} parent=11 // pred_region
          _
        $region40: #{tpu_custom_call.1} parent=11 // pred_fallthru
          _
        // Predicated region
        $region41: #{tpu_custom_call.1} parent=11 // pred_check
          %p416 = pneg %p270
        $region42: #{tpu_custom_call.1} parent=11 // pred_check_branch
          %418 = sbr.rel (%p416) target = $region44
        $region43: #{tpu_custom_call.1} parent=11 // pred_region
          _
        $region44: #{tpu_custom_call.1} parent=11 // pred_fallthru
          _
        // Predicated region
        $region45: #{tpu_custom_call.1} parent=11 // pred_check
          %p419 = pneg %p291
        $region46: #{tpu_custom_call.1} parent=11 // pred_check_branch
          %421 = sbr.rel (%p419) target = $region48
        $region47: #{tpu_custom_call.1} parent=11 // pred_region
          _
        $region48: #{tpu_custom_call.1} parent=11 // pred_fallthru
          _
        // Predicated region
        $region49: #{tpu_custom_call.1} parent=11 // pred_check
          %p422 = pneg %p312
        $region50: #{tpu_custom_call.1} parent=11 // pred_check_branch
          %424 = sbr.rel (%p422) target = $region52
        $region51: #{tpu_custom_call.1} parent=11 // pred_region
          _
        $region52: #{tpu_custom_call.1} parent=11 // pred_fallthru
          _
        // Predicated region
        $region53: #{tpu_custom_call.1} parent=11 // pred_check
          %p425 = pneg %p333
        $region54: #{tpu_custom_call.1} parent=11 // pred_check_branch
          %427 = sbr.rel (%p425) target = $region56
        $region55: #{tpu_custom_call.1} parent=11 // pred_region
          _
        $region56: #{tpu_custom_call.1} parent=11 // pred_fallthru
          _
        // Predicated region
        $region57: #{tpu_custom_call.1} parent=11 // pred_check
          %p428 = pneg %p354
        $region58: #{tpu_custom_call.1} parent=11 // pred_check_branch
          %430 = sbr.rel (%p428) target = $region60
        $region59: #{tpu_custom_call.1} parent=11 // pred_region
          _
        $region60: #{tpu_custom_call.1} parent=11 // pred_fallthru
          _
      $region12: #{tpu_custom_call.1} parent=5 // pred_fallthru
        _
      %p431 = scmp.lt.s32.totalorder %s24, 2
      // Predicated region
      $region61: #{tpu_custom_call.1} parent=5 // pred_check
        %p432 = pneg %p431
      $region62: #{tpu_custom_call.1} parent=5 // pred_check_branch
        %434 = sbr.rel (%p432) target = $region64
      $region63: #{tpu_custom_call.1} parent=5 // pred_region
        // Predicated region
        $region65: #{tpu_custom_call.1} parent=63 // pred_check
          %p435 = pneg %p44
        $region66: #{tpu_custom_call.1} parent=63 // pred_check_branch
          %437 = sbr.rel (%p435) target = $region68
        $region67: #{tpu_custom_call.1} parent=63 // pred_region
          %p438 = scmp.lt.s32.totalorder %s24, 1
          %s439 = scalar_select %p438, %s24, 1
          %s440 = smul.addr %s439, 2
          %s441 = smul.addr %s440, 8
          %s442 = scalar_lea.vmem %s0, %s441
        $region68: #{tpu_custom_call.1} parent=63 // pred_fallthru
          _
        // Predicated region
        $region69: #{tpu_custom_call.1} parent=63 // pred_check
          %p443 = pneg %p70
        $region70: #{tpu_custom_call.1} parent=63 // pred_check_branch
          %445 = sbr.rel (%p443) target = $region72
        $region71: #{tpu_custom_call.1} parent=63 // pred_region
          %p446 = scmp.lt.s32.totalorder %s24, 1
          %s447 = scalar_select %p446, %s24, 1
          %s448 = smul.addr %s447, 2
          %s449 = smul.addr %s448, 8
          %s450 = scalar_lea.vmem %s1, %s449
        $region72: #{tpu_custom_call.1} parent=63 // pred_fallthru
          _
        // Predicated region
        $region73: #{tpu_custom_call.1} parent=63 // pred_check
          %p451 = pneg %p96
        $region74: #{tpu_custom_call.1} parent=63 // pred_check_branch
          %453 = sbr.rel (%p451) target = $region76
        $region75: #{tpu_custom_call.1} parent=63 // pred_region
          %p454 = scmp.lt.s32.totalorder %s24, 1
          %s455 = scalar_select %p454, %s24, 1
          %s456 = smul.addr %s455, 2
          %s457 = smul.addr %s456, 8
          %s458 = scalar_lea.vmem %s2, %s457
        $region76: #{tpu_custom_call.1} parent=63 // pred_fallthru
          _
      $region64: #{tpu_custom_call.1} parent=5 // pred_fallthru
        _
      %p459 = scmp.le.s32.totalorder 1, %s24
      %p460 = scmp.lt.s32.totalorder %s24, 3
      %p461 = pnand %p459, %p460
      %p462 = pneg %p461
      // Predicated region
      $region77: #{tpu_custom_call.1} parent=5 // pred_check
        _
      $region78: #{tpu_custom_call.1} parent=5 // pred_check_branch
        %464 = sbr.rel (%p461) target = $region80
      $region79: #{tpu_custom_call.1} parent=5 // pred_region
        %s465 = ssub.s32 %s24, 1
        %p466 = scmp.lt.s32.totalorder %s29, 1
        %s467 = scalar_select %p466, %s29, 1
        %s468 = smul.addr %s467, 2
        %s469 = smul.addr %s468, 8
        %s470 = scalar_lea.vmem %s0, %s469
        %p471 = pneg %p50
        %p472 = pneg %p47
        %p473 = scmp.lt.s32.totalorder %s29, 1
        %s474 = scalar_select %p473, %s29, 1
        %s475 = smul.addr %s474, 2
        %s476 = smul.addr %s475, 8
        %s477 = scalar_lea.vmem %s1, %s476
        %p478 = pneg %p76
        %p479 = pneg %p73
        %p480 = scmp.lt.s32.totalorder %s29, 1
        %s481 = scalar_select %p480, %s29, 1
        %s482 = smul.addr %s481, 2
        %s483 = smul.addr %s482, 8
        %s484 = scalar_lea.vmem %s2, %s483
        %p485 = pneg %p102
        %p486 = pneg %p99
        %p487 = pneg %p123
        %p488 = pneg %p120
        %p489 = pneg %p144
        %p490 = pneg %p141
        %p491 = pneg %p165
        %p492 = pneg %p162
        %p493 = pneg %p186
        %p494 = pneg %p183
        %p495 = pneg %p207
        %p496 = pneg %p204
        %p497 = pneg %p228
        %p498 = pneg %p225
        %p499 = pneg %p249
        %p500 = pneg %p246
        %p501 = pneg %p270
        %p502 = pneg %p267
        %p503 = pneg %p291
        %p504 = pneg %p288
        %p505 = pneg %p312
        %p506 = pneg %p309
        %p507 = pneg %p333
        %p508 = pneg %p330
        %p509 = pneg %p354
        %p510 = pneg %p351
        %p511 = pneg %p380
        %p512 = pneg %p377
        %s513 = sand.u32 %s367, 1
        %s514 = scalar_lea.sflag [#allocation3], %s513
        %s515 = sand.u32 %s367, 1
        %s516 = smul.addr %s515, 32
        %s517 = scalar_lea.vmem [#allocation2], %s516
        %p518 = scmp.lt.s32.totalorder %s29, 1
        %s519 = scalar_select %p518, %s29, 1
        %s520 = smul.addr %s519, 2
        %s521 = smul.addr %s520, 8
        %s522 = scalar_lea.vmem %s0, %s521
        %p523 = scmp.lt.s32.totalorder %s29, 1
        %s524 = scalar_select %p523, %s29, 1
        %s525 = smul.addr %s524, 2
        %s526 = smul.addr %s525, 8
        %s527 = scalar_lea.vmem %s1, %s526
        %p528 = scmp.lt.s32.totalorder %s29, 1
        %s529 = scalar_select %p528, %s29, 1
        %s530 = smul.addr %s529, 2
        %s531 = smul.addr %s530, 8
        %s532 = scalar_lea.vmem %s2, %s531
        %v533 = vld [vmem:[%s522] sm:$0xff]
        %v534 = vld [vmem:[%s522 + $0x8] sm:$0xff]
        %v535 = vld [vmem:[%s5] sm:$0xff]
        %v536 = vld [vmem:[%s5 + $0x8] sm:$0xff]
        %537 = vrot.lane.b32.xlu0 %v533, 17
        %v538 = vpop.permute.xlu0 %537
        %539 = vrot.lane.b32.xlu0 %v534, 17
        %v540 = vpop.permute.xlu0 %539
        %v541 = vlaneseq
        %v542 = vand.u32 %v541, 127
        %vm543 = vcmp.lt.s32.totalorder %v542, 17
        %v544 = vsel %vm543, %v538, %v540
        %v545 = vsel %vm543, %v540, %v538
        %v546 = vld [vmem:[%s3] sm:$0x3]
        %v548 = vlaneseq
        %v549 = vshrl.u32 %v548, 7
        %v550 = vsub.s32 0, %v549
        %v551 = vrot.slane %v546, %v550
        %v552 = vlaneseq
        %v553 = vshrl.u32 %v552, 7
        %v554 = vsub.s32 1, %v553
        %v555 = vrot.slane %v546, %v554
        %v558 = vmul.f32 %v545, %v551
        %v559 = vmul.f32 %v544, %v555
        %560 = vrot.lane.b32.xlu0 %v533, 16
        %v561 = vpop.permute.xlu0 %560
        %562 = vrot.lane.b32.xlu0 %v534, 16
        %v563 = vpop.permute.xlu0 %562
        %vm564 = vcmp.lt.s32.totalorder %v542, 16
        %v565 = vsel %vm564, %v561, %v563
        %v566 = vsel %vm564, %v563, %v561
        %s567 = scalar_lea.vmem %s3, 2
        %v568 = vld [vmem:[%s567] sm:$0x3]
        %v570 = vlaneseq
        %v571 = vshrl.u32 %v570, 7
        %v572 = vsub.s32 0, %v571
        %v573 = vrot.slane %v568, %v572
        %v574 = vlaneseq
        %v575 = vshrl.u32 %v574, 7
        %v576 = vsub.s32 1, %v575
        %v577 = vrot.slane %v568, %v576
        %v580 = vmul.f32 %v566, %v573
        %v581 = vmul.f32 %v565, %v577
        %582 = vrot.lane.b32.xlu0 %v533, 15
        %v583 = vpop.permute.xlu0 %582
        %584 = vrot.lane.b32.xlu0 %v534, 15
        %v585 = vpop.permute.xlu0 %584
        %vm586 = vcmp.lt.s32.totalorder %v542, 15
        %v587 = vsel %vm586, %v583, %v585
        %v588 = vsel %vm586, %v585, %v583
        %s589 = scalar_lea.vmem %s3, 4
        %v590 = vld [vmem:[%s589] sm:$0x3]
        %v592 = vlaneseq
        %v593 = vshrl.u32 %v592, 7
        %v594 = vsub.s32 0, %v593
        %v595 = vrot.slane %v590, %v594
        %v596 = vlaneseq
        %v597 = vshrl.u32 %v596, 7
        %v598 = vsub.s32 1, %v597
        %v599 = vrot.slane %v590, %v598
        %v602 = vmul.f32 %v588, %v595
        %v603 = vmul.f32 %v587, %v599
        %604 = vrot.lane.b32.xlu0 %v533, 1
        %v605 = vpop.permute.xlu0 %604
        %606 = vrot.lane.b32.xlu0 %v534, 1
        %v607 = vpop.permute.xlu0 %606
        %vm608 = vcmp.lt.s32.totalorder %v542, 1
        %v609 = vsel %vm608, %v605, %v607
        %v610 = vsel %vm608, %v607, %v605
        %s611 = scalar_lea.vmem %s3, 6
        %v612 = vld [vmem:[%s611] sm:$0x3]
        %v614 = vlaneseq
        %v615 = vshrl.u32 %v614, 7
        %v616 = vsub.s32 0, %v615
        %v617 = vrot.slane %v612, %v616
        %v618 = vlaneseq
        %v619 = vshrl.u32 %v618, 7
        %v620 = vsub.s32 1, %v619
        %v621 = vrot.slane %v612, %v620
        %v624 = vmul.f32 %v610, %v617
        %v625 = vmul.f32 %v609, %v621
        %626 = vrot.lane.b32.xlu0 %v533, 127
        %v627 = vpop.permute.xlu0 %626
        %628 = vrot.lane.b32.xlu0 %v534, 127
        %v629 = vpop.permute.xlu0 %628
        %vm630 = vcmp.lt.s32.totalorder %v542, 127
        %v631 = vsel %vm630, %v627, %v629
        %v632 = vsel %vm630, %v629, %v627
        %s633 = scalar_lea.vmem %s3, 10
        %v634 = vld [vmem:[%s633] sm:$0x3]
        %v636 = vlaneseq
        %v637 = vshrl.u32 %v636, 7
        %v638 = vsub.s32 0, %v637
        %v639 = vrot.slane %v634, %v638
        %v640 = vlaneseq
        %v641 = vshrl.u32 %v640, 7
        %v642 = vsub.s32 1, %v641
        %v643 = vrot.slane %v634, %v642
        %v646 = vmul.f32 %v631, %v639
        %v647 = vmul.f32 %v632, %v643
        %648 = vrot.lane.b32.xlu0 %v533, 113
        %v649 = vpop.permute.xlu0 %648
        %650 = vrot.lane.b32.xlu0 %v534, 113
        %v651 = vpop.permute.xlu0 %650
        %vm652 = vcmp.lt.s32.totalorder %v542, 113
        %v653 = vsel %vm652, %v649, %v651
        %v654 = vsel %vm652, %v651, %v649
        %s655 = scalar_lea.vmem %s3, 12
        %v656 = vld [vmem:[%s655] sm:$0x3]
        %v658 = vlaneseq
        %v659 = vshrl.u32 %v658, 7
        %v660 = vsub.s32 0, %v659
        %v661 = vrot.slane %v656, %v660
        %v662 = vlaneseq
        %v663 = vshrl.u32 %v662, 7
        %v664 = vsub.s32 1, %v663
        %v665 = vrot.slane %v656, %v664
        %v668 = vmul.f32 %v653, %v661
        %v669 = vmul.f32 %v654, %v665
        %670 = vrot.lane.b32.xlu0 %v533, 112
        %v671 = vpop.permute.xlu0 %670
        %672 = vrot.lane.b32.xlu0 %v534, 112
        %v673 = vpop.permute.xlu0 %672
        %vm674 = vcmp.lt.s32.totalorder %v542, 112
        %v675 = vsel %vm674, %v671, %v673
        %v676 = vsel %vm674, %v673, %v671
        %s677 = scalar_lea.vmem %s3, 14
        %v678 = vld [vmem:[%s677] sm:$0x3]
        %v680 = vlaneseq
        %v681 = vshrl.u32 %v680, 7
        %v682 = vsub.s32 0, %v681
        %v683 = vrot.slane %v678, %v682
        %v684 = vlaneseq
        %v685 = vshrl.u32 %v684, 7
        %v686 = vsub.s32 1, %v685
        %v687 = vrot.slane %v678, %v686
        %v690 = vmul.f32 %v675, %v683
        %v691 = vmul.f32 %v676, %v687
        %692 = vrot.lane.b32.xlu0 %v533, 111
        %v693 = vpop.permute.xlu0 %692
        %694 = vrot.lane.b32.xlu0 %v534, 111
        %v695 = vpop.permute.xlu0 %694
        %vm696 = vcmp.lt.s32.totalorder %v542, 111
        %v697 = vsel %vm696, %v693, %v695
        %v698 = vsel %vm696, %v695, %v693
        %s699 = scalar_lea.vmem %s3, 16
        %v700 = vld [vmem:[%s699] sm:$0x3]
        %v702 = vlaneseq
        %v703 = vshrl.u32 %v702, 7
        %v704 = vsub.s32 0, %v703
        %v705 = vrot.slane %v700, %v704
        %v706 = vlaneseq
        %v707 = vshrl.u32 %v706, 7
        %v708 = vsub.s32 1, %v707
        %v709 = vrot.slane %v700, %v708
        %v712 = vmul.f32 %v697, %v705
        %v713 = vmul.f32 %v698, %v709
        %vm714 = vcmask 588800
        %v716 = vsel %vm714, %v535, 0
        %v719 = vsel %vm714, %v536, 0
        %721 = vmatprep.subr.mxu0 0.0
        %722 = vmatpush1.msra.mxu0 0.0
        %723 = vmatprep.subr.mxu0 0.0
        %724 = vmatpush1.msra.mxu0 0.0
        %725 = vmatprep.subr.mxu0 0.0
        %726 = vmatpush1.msra.mxu0 0.0
        %727 = vmatprep.subr.mxu0 0.0
        %728 = vmatpush1.msra.mxu0 0.0
        %729 = vmatprep.subr.mxu0 0.0
        %730 = vmatpush1.msra.mxu0 0.0
        %731 = vmatprep.subr.mxu0 0.0
        %732 = vmatpush1.msra.mxu0 0.0
        %733 = vmatprep.subr.mxu0 0.0
        %734 = vmatpush1.msra.mxu0 0.0
        %735 = vmatprep.subr.mxu0 %v713
        %736 = vmatpush1.msra.mxu0 %v712
        %737 = vmatprep.subr.mxu0 %v691
        %738 = vmatpush1.msra.mxu0 %v690
        %739 = vmatprep.subr.mxu0 %v669
        %740 = vmatpush1.msra.mxu0 %v668
        %741 = vmatprep.subr.mxu0 %v647
        %742 = vmatpush1.msra.mxu0 %v646
        %743 = vmatprep.subr.mxu0 %v534
        %744 = vmatpush1.msra.mxu0 %v533
        %745 = vmatprep.subr.mxu0 %v625
        %746 = vmatpush1.msra.mxu0 %v624
        %747 = vmatprep.subr.mxu0 %v603
        %748 = vmatpush1.msra.mxu0 %v602
        %749 = vmatprep.subr.mxu0 %v581
        %750 = vmatpush1.msra.mxu0 %v580
        %751 = vmatprep.subr.mxu0 %v559
        %752 = vmatpush1.msra.mxu0 %v558
        %753 = vmatprep.subr.mxu0 0.0
        %754 = vmatpush2.msra.mxu0 0.0
        %755 = vmatprep.subr.mxu0 0.0
        %756 = vmatpush2.msra.mxu0 0.0
        %757 = vmatprep.subr.mxu0 0.0
        %758 = vmatpush2.msra.mxu0 0.0
        %759 = vmatprep.subr.mxu0 0.0
        %760 = vmatpush2.msra.mxu0 0.0
        %761 = vmatprep.subr.mxu0 0.0
        %762 = vmatpush2.msra.mxu0 0.0
        %763 = vmatprep.subr.mxu0 0.0
        %764 = vmatpush2.msra.mxu0 0.0
        %765 = vmatprep.subr.mxu0 0.0
        %766 = vmatpush2.msra.mxu0 0.0
        %767 = vmatprep.subr.mxu0 0.0
        %768 = vmatpush2.msra.mxu0 0.0
        %769 = vmatprep.subr.mxu0 0.0
        %770 = vmatpush2.msra.mxu0 0.0
        %771 = vmatprep.subr.mxu0 0.0
        %772 = vmatpush2.msra.mxu0 0.0
        %773 = vmatprep.subr.mxu0 0.0
        %774 = vmatpush2.msra.mxu0 0.0
        %775 = vmatprep.subr.mxu0 0.0
        %776 = vmatpush2.msra.mxu0 0.0
        %777 = vmatprep.subr.mxu0 0.0
        %778 = vmatpush2.msra.mxu0 0.0
        %779 = vmatprep.subr.mxu0 0.0
        %780 = vmatpush2.msra.mxu0 0.0
        %781 = vmatprep.subr.mxu0 0.0
        %782 = vmatpush2.msra.mxu0 0.0
        %783 = vmatprep.subr.mxu0 0.0
        %784 = vmatpush2.msra.mxu0 0.0
        %785 = vmatprep.mubr.f32.mxu0 0.0
        %786 = vmatmul.mubr.f32.gmra.mxu0 %v716
        %v787 = vpop.f32.mrf.mxu0
        %v788 = vadd.f32 0.0, %v787
        %v789 = vpop.f32.mrf.mxu0
        %v790 = vadd.f32 0.0, %v789
        %791 = vmatprep.mubr.f32.mxu0 0.0
        %792 = vmatmul.mubr.f32.gmra.mxu0 %v719
        %v793 = vpop.f32.mrf.mxu0
        %v794 = vadd.f32 0.0, %v793
        %v795 = vpop.f32.mrf.mxu0
        %v796 = vadd.f32 0.0, %v795
        %797 = vdwg.mxu0
        %v798 = vld [vmem:[%s6] sm:$0xff]
        %v799 = vld [vmem:[%s6 + $0x8] sm:$0xff]
        %v800 = vld [vmem:[%s7] sm:$0xff]
        %v801 = vld [vmem:[%s7 + $0x8] sm:$0xff]
        %v802 = vld [vmem:[%s8] sm:$0xff]
        %v803 = vld [vmem:[%s8 + $0x8] sm:$0xff]
        %v804 = vld [vmem:[%s527] sm:$0xff]
        %v805 = vld [vmem:[%s527 + $0x8] sm:$0xff]
        %v806 = vld [vmem:[%s532] sm:$0xff]
        %v807 = vld [vmem:[%s532 + $0x8] sm:$0xff]
        %v808 = vadd.f32 %v788, %v790
        %809 = vadd.xlane.f32.xlu0 %v808
        %v810 = vpop.xlane.xlu0 %809
        %v811 = vadd.f32 %v794, %v796
        %812 = vadd.xlane.f32.xlu0 %v811
        %v813 = vpop.xlane.xlu0 %812
        %v814 = vmul.f32 %v788, %v788
        %v815 = vmul.f32 %v790, %v790
        %v816 = vmul.f32 %v794, %v794
        %v817 = vmul.f32 %v796, %v796
        %v818 = vadd.f32 %v814, %v815
        %819 = vadd.xlane.f32.xlu0 %v818
        %v820 = vpop.xlane.xlu0 %819
        %v821 = vadd.f32 %v816, %v817
        %822 = vadd.xlane.f32.xlu0 %v821
        %v823 = vpop.xlane.xlu0 %822
        %v824 = vmul.f32 %v798, 256.0
        %v825 = vmul.f32 %v799, 256.0
        %v826 = vadd.f32 %v810, %v824
        %v827 = vadd.f32 %v813, %v825
        %v828 = vmul.f32 %v798, 2.0
        %v829 = vmul.f32 %v799, 2.0
        %v830 = vmul.f32 %v828, %v810
        %v831 = vmul.f32 %v829, %v813
        %v832 = vadd.f32 %v820, %v830
        %v833 = vadd.f32 %v823, %v831
        %v834 = vmul.f32 %v824, %v798
        %v835 = vmul.f32 %v825, %v799
        %v836 = vadd.f32 %v832, %v834
        %v837 = vadd.f32 %v833, %v835
        %v838 = vld [vmem:[%s4] sm:$0xff]
        %v839 = vld [vmem:[%s4 + $0x8] sm:$0xff]
        %842 = vrot.lane.b32.xlu0 %v836, 1
        %v843 = vpop.permute.xlu0 %842
        %844 = vrot.lane.b32.xlu0 %v837, 1
        %v845 = vpop.permute.xlu0 %844
        %vm848 = vcmask 7168
        %v849 = vsel %vm848, %v826, %v843
        %v850 = vsel %vm848, %v827, %v845
        %vm851 = vcmask 130048
        %v853 = vsel %vm851, %v838, 0
        %v856 = vsel %vm851, %v839, 0
        %858 = vmatprep.subr.mxu0 0.0
        %859 = vmatpush1.msra.mxu0 0.0
        %860 = vmatprep.subr.mxu0 0.0
        %861 = vmatpush1.msra.mxu0 0.0
        %862 = vmatprep.subr.mxu0 0.0
        %863 = vmatpush1.msra.mxu0 0.0
        %864 = vmatprep.subr.mxu0 0.0
        %865 = vmatpush1.msra.mxu0 0.0
        %866 = vmatprep.subr.mxu0 0.0
        %867 = vmatpush1.msra.mxu0 0.0
        %868 = vmatprep.subr.mxu0 0.0
        %869 = vmatpush1.msra.mxu0 0.0
        %870 = vmatprep.subr.mxu0 0.0
        %871 = vmatpush1.msra.mxu0 0.0
        %872 = vmatprep.subr.mxu0 0.0
        %873 = vmatpush1.msra.mxu0 0.0
        %874 = vmatprep.subr.mxu0 0.0
        %875 = vmatpush1.msra.mxu0 0.0
        %876 = vmatprep.subr.mxu0 0.0
        %877 = vmatpush1.msra.mxu0 0.0
        %878 = vmatprep.subr.mxu0 0.0
        %879 = vmatpush1.msra.mxu0 0.0
        %880 = vmatprep.subr.mxu0 0.0
        %881 = vmatpush1.msra.mxu0 0.0
        %882 = vmatprep.subr.mxu0 0.0
        %883 = vmatpush1.msra.mxu0 0.0
        %884 = vmatprep.subr.mxu0 0.0
        %885 = vmatpush1.msra.mxu0 0.0
        %886 = vmatprep.subr.mxu0 0.0
        %887 = vmatpush1.msra.mxu0 %v850
        %888 = vmatprep.subr.mxu0 0.0
        %889 = vmatpush1.msra.mxu0 %v849
        %890 = vmatprep.subr.mxu0 0.0
        %891 = vmatpush2.msra.mxu0 0.0
        %892 = vmatprep.subr.mxu0 0.0
        %893 = vmatpush2.msra.mxu0 0.0
        %894 = vmatprep.subr.mxu0 0.0
        %895 = vmatpush2.msra.mxu0 0.0
        %896 = vmatprep.subr.mxu0 0.0
        %897 = vmatpush2.msra.mxu0 0.0
        %898 = vmatprep.subr.mxu0 0.0
        %899 = vmatpush2.msra.mxu0 0.0
        %900 = vmatprep.subr.mxu0 0.0
        %901 = vmatpush2.msra.mxu0 0.0
        %902 = vmatprep.subr.mxu0 0.0
        %903 = vmatpush2.msra.mxu0 0.0
        %904 = vmatprep.subr.mxu0 0.0
        %905 = vmatpush2.msra.mxu0 0.0
        %906 = vmatprep.subr.mxu0 0.0
        %907 = vmatpush2.msra.mxu0 0.0
        %908 = vmatprep.subr.mxu0 0.0
        %909 = vmatpush2.msra.mxu0 0.0
        %910 = vmatprep.subr.mxu0 0.0
        %911 = vmatpush2.msra.mxu0 0.0
        %912 = vmatprep.subr.mxu0 0.0
        %913 = vmatpush2.msra.mxu0 0.0
        %914 = vmatprep.subr.mxu0 0.0
        %915 = vmatpush2.msra.mxu0 0.0
        %916 = vmatprep.subr.mxu0 0.0
        %917 = vmatpush2.msra.mxu0 0.0
        %918 = vmatprep.subr.mxu0 0.0
        %919 = vmatpush2.msra.mxu0 0.0
        %920 = vmatprep.subr.mxu0 0.0
        %921 = vmatpush2.msra.mxu0 0.0
        %922 = vmatprep.mubr.f32.mxu0 0.0
        %923 = vmatmul.mubr.f32.gmra.mxu0 %v853
        %v924 = vpop.f32.mrf.mxu0
        %v925 = vadd.f32 0.0, %v924
        %v926 = vpop.f32.mrf.mxu0
        %927 = vmatprep.mubr.f32.mxu0 0.0
        %928 = vmatmul.mubr.f32.gmra.mxu0 %v856
        %v929 = vpop.f32.mrf.mxu0
        %v930 = vadd.f32 0.0, %v929
        %v931 = vpop.f32.mrf.mxu0
        %932 = vdwg.mxu0
        %v933 = vmul.f32 %v925, %v925
        %v934 = vmul.f32 %v930, %v930
        %937 = vrot.lane.b32.xlu0 %v933, 1
        %v938 = vpop.permute.xlu0 %937
        %939 = vrot.lane.b32.xlu0 %v934, 1
        %v940 = vpop.permute.xlu0 %939
        %v943 = vsub.f32 %v925, %v938
        %v944 = vsub.f32 %v930, %v940
        %v945 = vadd.f32 %v943, 1e-05
        %v946 = vadd.f32 %v944, 1e-05
        %v947 = vrsqrt.pop %v945
        %v948 = vrsqrt.pop %v946
        %951 = vrot.lane.b32.xlu0 %v800, 1
        %v952 = vpop.permute.xlu0 %951
        %953 = vrot.lane.b32.xlu0 %v801, 1
        %v954 = vpop.permute.xlu0 %953
        %v957 = vmul.f32 %v947, %v952
        %v958 = vmul.f32 %v948, %v954
        %v959 = vsub.f32 %v798, %v925
        %v960 = vsub.f32 %v799, %v930
        %963 = vrot.lane.b32.xlu0 %v957, 127
        %v964 = vpop.permute.xlu0 %963
        %965 = vrot.lane.b32.xlu0 %v958, 127
        %v966 = vpop.permute.xlu0 %965
        %v969 = vmul.f32 %v959, %v964
        %v970 = vmul.f32 %v960, %v966
        %v971 = vadd.f32 %v969, %v802
        %v972 = vadd.f32 %v970, %v803
        %v973 = vadd.f32 %v804, 1.0
        %v974 = vadd.f32 %v805, 1.0
        %977 = vrot.lane.b32.xlu0 %v973, 1
        %v978 = vpop.permute.xlu0 %977
        %979 = vrot.lane.b32.xlu0 %v974, 1
        %v980 = vpop.permute.xlu0 %979
        %v983 = vmul.f32 %v957, %v978
        %v984 = vmul.f32 %v958, %v980
        %v985 = vmul.f32 %v971, %v973
        %v986 = vmul.f32 %v972, %v974
        %v987 = vadd.f32 %v985, %v806
        %v988 = vadd.f32 %v986, %v807
        %990 = vset.pattern.permute.xlu0 1
        %991 = vperm.xlu0 %990, %v983
        %v992 = vpop.permute.xlu0 %991
        %995 = vset.pattern.permute.xlu0 1
        %996 = vperm.xlu0 %995, %v984
        %v997 = vpop.permute.xlu0 %996
        %v999 = vmul.f32 %v788, %v992
        %v1000 = vmul.f32 %v790, %v992
        %v1001 = vmul.f32 %v794, %v997
        %v1002 = vmul.f32 %v796, %v997
        %1004 = vset.pattern.permute.xlu0 0
        %1005 = vperm.xlu0 %1004, %v987
        %v1006 = vpop.permute.xlu0 %1005
        %1009 = vset.pattern.permute.xlu0 0
        %1010 = vperm.xlu0 %1009, %v988
        %v1011 = vpop.permute.xlu0 %1010
        %v1013 = vadd.f32 %v999, %v1006
        %v1014 = vadd.f32 %v1000, %v1006
        %v1015 = vadd.f32 %v1001, %v1011
        %v1016 = vadd.f32 %v1002, %v1011
        %v1017 = vxor.u32 %v1013, 2147483648
        %v1018 = vxor.u32 %v1014, 2147483648
        %v1019 = vxor.u32 %v1015, 2147483648
        %v1020 = vxor.u32 %v1016, 2147483648
        %v1021 = vmul.f32 %v1017, 1.442695
        %v1022 = vpow.pop %v1021
        %v1023 = vmul.f32 %v1018, 1.442695
        %v1024 = vpow.pop %v1023
        %v1025 = vmul.f32 %v1019, 1.442695
        %v1026 = vpow.pop %v1025
        %v1027 = vmul.f32 %v1020, 1.442695
        %v1028 = vpow.pop %v1027
        %v1029 = vadd.f32 %v1022, 1.0
        %v1030 = vadd.f32 %v1024, 1.0
        %v1031 = vadd.f32 %v1026, 1.0
        %v1032 = vadd.f32 %v1028, 1.0
        %v1033 = vrcp.pop %v1029
        %v1034 = vmul.f32 1.0, %v1033
        %v1035 = vrcp.pop %v1030
        %v1036 = vmul.f32 1.0, %v1035
        %v1037 = vrcp.pop %v1031
        %v1038 = vmul.f32 1.0, %v1037
        %v1039 = vrcp.pop %v1032
        %v1040 = vmul.f32 1.0, %v1039
        %v1041 = vmul.f32 %v1013, %v1034
        %v1042 = vmul.f32 %v1014, %v1036
        %v1043 = vmul.f32 %v1015, %v1038
        %v1044 = vmul.f32 %v1016, %v1040
        %v1045 = vld [vmem:[%s9] sm:$0xff]
        %v1046 = vld [vmem:[%s9 + $0x8] sm:$0xff]
        %v1047 = vld [vmem:[%s9 + $0x10] sm:$0xff]
        %v1048 = vld [vmem:[%s9 + $0x18] sm:$0xff]
        %1049 = vrot.lane.b32.xlu0 %v1041, 17
        %v1050 = vpop.permute.xlu0 %1049
        %1051 = vrot.lane.b32.xlu0 %v1043, 17
        %v1052 = vpop.permute.xlu0 %1051
        %1053 = vrot.lane.b32.xlu0 %v1042, 17
        %v1054 = vpop.permute.xlu0 %1053
        %1055 = vrot.lane.b32.xlu0 %v1044, 17
        %v1056 = vpop.permute.xlu0 %1055
        %v1057 = vsel %vm543, %v1050, %v1054
        %v1058 = vsel %vm543, %v1052, %v1056
        %v1059 = vsel %vm543, %v1054, %v1050
        %v1060 = vsel %vm543, %v1056, %v1052
        %v1061 = vmul.f32 %v1059, %v551
        %v1062 = vmul.f32 %v1057, %v555
        %v1063 = vmul.f32 %v1060, %v551
        %v1064 = vmul.f32 %v1058, %v555
        %1065 = vrot.lane.b32.xlu0 %v1041, 16
        %v1066 = vpop.permute.xlu0 %1065
        %1067 = vrot.lane.b32.xlu0 %v1043, 16
        %v1068 = vpop.permute.xlu0 %1067
        %1069 = vrot.lane.b32.xlu0 %v1042, 16
        %v1070 = vpop.permute.xlu0 %1069
        %1071 = vrot.lane.b32.xlu0 %v1044, 16
        %v1072 = vpop.permute.xlu0 %1071
        %v1073 = vsel %vm564, %v1066, %v1070
        %v1074 = vsel %vm564, %v1068, %v1072
        %v1075 = vsel %vm564, %v1070, %v1066
        %v1076 = vsel %vm564, %v1072, %v1068
        %v1077 = vmul.f32 %v1075, %v573
        %v1078 = vmul.f32 %v1073, %v577
        %v1079 = vmul.f32 %v1076, %v573
        %v1080 = vmul.f32 %v1074, %v577
        %1081 = vrot.lane.b32.xlu0 %v1041, 15
        %v1082 = vpop.permute.xlu0 %1081
        %1083 = vrot.lane.b32.xlu0 %v1043, 15
        %v1084 = vpop.permute.xlu0 %1083
        %1085 = vrot.lane.b32.xlu0 %v1042, 15
        %v1086 = vpop.permute.xlu0 %1085
        %1087 = vrot.lane.b32.xlu0 %v1044, 15
        %v1088 = vpop.permute.xlu0 %1087
        %v1089 = vsel %vm586, %v1082, %v1086
        %v1090 = vsel %vm586, %v1084, %v1088
        %v1091 = vsel %vm586, %v1086, %v1082
        %v1092 = vsel %vm586, %v1088, %v1084
        %v1093 = vmul.f32 %v1091, %v595
        %v1094 = vmul.f32 %v1089, %v599
        %v1095 = vmul.f32 %v1092, %v595
        %v1096 = vmul.f32 %v1090, %v599
        %1097 = vrot.lane.b32.xlu0 %v1041, 1
        %v1098 = vpop.permute.xlu0 %1097
        %1099 = vrot.lane.b32.xlu0 %v1043, 1
        %v1100 = vpop.permute.xlu0 %1099
        %1101 = vrot.lane.b32.xlu0 %v1042, 1
        %v1102 = vpop.permute.xlu0 %1101
        %1103 = vrot.lane.b32.xlu0 %v1044, 1
        %v1104 = vpop.permute.xlu0 %1103
        %v1105 = vsel %vm608, %v1098, %v1102
        %v1106 = vsel %vm608, %v1100, %v1104
        %v1107 = vsel %vm608, %v1102, %v1098
        %v1108 = vsel %vm608, %v1104, %v1100
        %v1109 = vmul.f32 %v1107, %v617
        %v1110 = vmul.f32 %v1105, %v621
        %v1111 = vmul.f32 %v1108, %v617
        %v1112 = vmul.f32 %v1106, %v621
        %1113 = vrot.lane.b32.xlu0 %v1041, 127
        %v1114 = vpop.permute.xlu0 %1113
        %1115 = vrot.lane.b32.xlu0 %v1043, 127
        %v1116 = vpop.permute.xlu0 %1115
        %1117 = vrot.lane.b32.xlu0 %v1042, 127
        %v1118 = vpop.permute.xlu0 %1117
        %1119 = vrot.lane.b32.xlu0 %v1044, 127
        %v1120 = vpop.permute.xlu0 %1119
        %v1121 = vsel %vm630, %v1114, %v1118
        %v1122 = vsel %vm630, %v1116, %v1120
        %v1123 = vsel %vm630, %v1118, %v1114
        %v1124 = vsel %vm630, %v1120, %v1116
        %v1125 = vmul.f32 %v1121, %v639
        %v1126 = vmul.f32 %v1123, %v643
        %v1127 = vmul.f32 %v1122, %v639
        %v1128 = vmul.f32 %v1124, %v643
        %1129 = vrot.lane.b32.xlu0 %v1041, 113
        %v1130 = vpop.permute.xlu0 %1129
        %1131 = vrot.lane.b32.xlu0 %v1043, 113
        %v1132 = vpop.permute.xlu0 %1131
        %1133 = vrot.lane.b32.xlu0 %v1042, 113
        %v1134 = vpop.permute.xlu0 %1133
        %1135 = vrot.lane.b32.xlu0 %v1044, 113
        %v1136 = vpop.permute.xlu0 %1135
        %v1137 = vsel %vm652, %v1130, %v1134
        %v1138 = vsel %vm652, %v1132, %v1136
        %v1139 = vsel %vm652, %v1134, %v1130
        %v1140 = vsel %vm652, %v1136, %v1132
        %v1141 = vmul.f32 %v1137, %v661
        %v1142 = vmul.f32 %v1139, %v665
        %v1143 = vmul.f32 %v1138, %v661
        %v1144 = vmul.f32 %v1140, %v665
        %1145 = vrot.lane.b32.xlu0 %v1041, 112
        %v1146 = vpop.permute.xlu0 %1145
        %1147 = vrot.lane.b32.xlu0 %v1043, 112
        %v1148 = vpop.permute.xlu0 %1147
        %1149 = vrot.lane.b32.xlu0 %v1042, 112
        %v1150 = vpop.permute.xlu0 %1149
        %1151 = vrot.lane.b32.xlu0 %v1044, 112
        %v1152 = vpop.permute.xlu0 %1151
        %v1153 = vsel %vm674, %v1146, %v1150
        %v1154 = vsel %vm674, %v1148, %v1152
        %v1155 = vsel %vm674, %v1150, %v1146
        %v1156 = vsel %vm674, %v1152, %v1148
        %v1157 = vmul.f32 %v1153, %v683
        %v1158 = vmul.f32 %v1155, %v687
        %v1159 = vmul.f32 %v1154, %v683
        %v1160 = vmul.f32 %v1156, %v687
        %1161 = vrot.lane.b32.xlu0 %v1041, 111
        %v1162 = vpop.permute.xlu0 %1161
        %1163 = vrot.lane.b32.xlu0 %v1043, 111
        %v1164 = vpop.permute.xlu0 %1163
        %1165 = vrot.lane.b32.xlu0 %v1042, 111
        %v1166 = vpop.permute.xlu0 %1165
        %1167 = vrot.lane.b32.xlu0 %v1044, 111
        %v1168 = vpop.permute.xlu0 %1167
        %v1169 = vsel %vm696, %v1162, %v1166
        %v1170 = vsel %vm696, %v1164, %v1168
        %v1171 = vsel %vm696, %v1166, %v1162
        %v1172 = vsel %vm696, %v1168, %v1164
        %v1173 = vmul.f32 %v1169, %v705
        %v1174 = vmul.f32 %v1171, %v709
        %v1175 = vmul.f32 %v1170, %v705
        %v1176 = vmul.f32 %v1172, %v709
        %v1178 = vsel %vm851, %v1046, 0
        %v1181 = vsel %vm851, %v1048, 0
        %1183 = vmatprep.subr.mxu0 %v1160
        %1184 = vmatpush1.msra.mxu0 %v1159
        %1185 = vmatprep.subr.mxu0 %v1158
        %1186 = vmatpush1.msra.mxu0 %v1157
        %1187 = vmatprep.subr.mxu0 %v1144
        %1188 = vmatpush1.msra.mxu0 %v1143
        %1189 = vmatprep.subr.mxu0 %v1142
        %1190 = vmatpush1.msra.mxu0 %v1141
        %1191 = vmatprep.subr.mxu0 %v1128
        %1192 = vmatpush1.msra.mxu0 %v1127
        %1193 = vmatprep.subr.mxu0 %v1126
        %1194 = vmatpush1.msra.mxu0 %v1125
        %1195 = vmatprep.subr.mxu0 %v1044
        %1196 = vmatpush1.msra.mxu0 %v1043
        %1197 = vmatprep.subr.mxu0 %v1042
        %1198 = vmatpush1.msra.mxu0 %v1041
        %1199 = vmatprep.subr.mxu0 %v1112
        %1200 = vmatpush1.msra.mxu0 %v1111
        %1201 = vmatprep.subr.mxu0 %v1110
        %1202 = vmatpush1.msra.mxu0 %v1109
        %1203 = vmatprep.subr.mxu0 %v1096
        %1204 = vmatpush1.msra.mxu0 %v1095
        %1205 = vmatprep.subr.mxu0 %v1094
        %1206 = vmatpush1.msra.mxu0 %v1093
        %1207 = vmatprep.subr.mxu0 %v1080
        %1208 = vmatpush1.msra.mxu0 %v1079
        %1209 = vmatprep.subr.mxu0 %v1078
        %1210 = vmatpush1.msra.mxu0 %v1077
        %1211 = vmatprep.subr.mxu0 %v1064
        %1212 = vmatpush1.msra.mxu0 %v1063
        %1213 = vmatprep.subr.mxu0 %v1062
        %1214 = vmatpush1.msra.mxu0 %v1061
        %1215 = vmatprep.subr.mxu0 0.0
        %1216 = vmatpush2.msra.mxu0 0.0
        %1217 = vmatprep.subr.mxu0 0.0
        %1218 = vmatpush2.msra.mxu0 0.0
        %1219 = vmatprep.subr.mxu0 0.0
        %1220 = vmatpush2.msra.mxu0 0.0
        %1221 = vmatprep.subr.mxu0 0.0
        %1222 = vmatpush2.msra.mxu0 0.0
        %1223 = vmatprep.subr.mxu0 0.0
        %1224 = vmatpush2.msra.mxu0 0.0
        %1225 = vmatprep.subr.mxu0 0.0
        %1226 = vmatpush2.msra.mxu0 0.0
        %1227 = vmatprep.subr.mxu0 0.0
        %1228 = vmatpush2.msra.mxu0 0.0
        %1229 = vmatprep.subr.mxu0 0.0
        %1230 = vmatpush2.msra.mxu0 0.0
        %1231 = vmatprep.subr.mxu0 0.0
        %1232 = vmatpush2.msra.mxu0 0.0
        %1233 = vmatprep.subr.mxu0 0.0
        %1234 = vmatpush2.msra.mxu0 0.0
        %1235 = vmatprep.subr.mxu0 0.0
        %1236 = vmatpush2.msra.mxu0 0.0
        %1237 = vmatprep.subr.mxu0 0.0
        %1238 = vmatpush2.msra.mxu0 0.0
        %1239 = vmatprep.subr.mxu0 0.0
        %1240 = vmatpush2.msra.mxu0 0.0
        %1241 = vmatprep.subr.mxu0 0.0
        %1242 = vmatpush2.msra.mxu0 0.0
        %1243 = vmatprep.subr.mxu0 %v1176
        %1244 = vmatpush2.msra.mxu0 %v1175
        %1245 = vmatprep.subr.mxu0 %v1174
        %1246 = vmatpush2.msra.mxu0 %v1173
        %1247 = vmatprep.mubr.f32.mxu0 %v1178
        %1248 = vmatmul.mubr.f32.gmra.mxu0 %v1045
        %v1249 = vpop.f32.mrf.mxu0
        %v1250 = vadd.f32 0.0, %v1249
        %v1251 = vpop.f32.mrf.mxu0
        %v1252 = vadd.f32 0.0, %v1251
        %1253 = vmatprep.mubr.f32.mxu0 %v1181
        %1254 = vmatmul.mubr.f32.gmra.mxu0 %v1047
        %v1255 = vpop.f32.mrf.mxu0
        %v1256 = vadd.f32 0.0, %v1255
        %v1257 = vpop.f32.mrf.mxu0
        %v1258 = vadd.f32 0.0, %v1257
        %1259 = vdwg.mxu0
        %v1260 = vld [vmem:[%s10] sm:$0xff]
        %v1261 = vld [vmem:[%s10 + $0x8] sm:$0xff]
        %v1262 = vld [vmem:[%s11] sm:$0xff]
        %v1263 = vld [vmem:[%s11 + $0x8] sm:$0xff]
        %v1264 = vld [vmem:[%s12] sm:$0xff]
        %v1265 = vld [vmem:[%s12 + $0x8] sm:$0xff]
        %v1266 = vadd.f32 %v1250, %v1252
        %1267 = vadd.xlane.f32.xlu0 %v1266
        %v1268 = vpop.xlane.xlu0 %1267
        %v1269 = vadd.f32 %v1256, %v1258
        %1270 = vadd.xlane.f32.xlu0 %v1269
        %v1271 = vpop.xlane.xlu0 %1270
        %v1272 = vmul.f32 %v1250, %v1250
        %v1273 = vmul.f32 %v1252, %v1252
        %v1274 = vmul.f32 %v1256, %v1256
        %v1275 = vmul.f32 %v1258, %v1258
        %v1276 = vadd.f32 %v1272, %v1273
        %1277 = vadd.xlane.f32.xlu0 %v1276
        %v1278 = vpop.xlane.xlu0 %1277
        %v1279 = vadd.f32 %v1274, %v1275
        %1280 = vadd.xlane.f32.xlu0 %v1279
        %v1281 = vpop.xlane.xlu0 %1280
        %v1282 = vmul.f32 %v1260, 256.0
        %v1283 = vmul.f32 %v1261, 256.0
        %v1284 = vadd.f32 %v1268, %v1282
        %v1285 = vadd.f32 %v1271, %v1283
        %v1286 = vmul.f32 %v1260, 2.0
        %v1287 = vmul.f32 %v1261, 2.0
        %v1288 = vmul.f32 %v1286, %v1268
        %v1289 = vmul.f32 %v1287, %v1271
        %v1290 = vadd.f32 %v1278, %v1288
        %v1291 = vadd.f32 %v1281, %v1289
        %v1292 = vmul.f32 %v1282, %v1260
        %v1293 = vmul.f32 %v1283, %v1261
        %v1294 = vadd.f32 %v1290, %v1292
        %v1295 = vadd.f32 %v1291, %v1293
        %1298 = vrot.lane.b32.xlu0 %v1294, 1
        %v1299 = vpop.permute.xlu0 %1298
        %1300 = vrot.lane.b32.xlu0 %v1295, 1
        %v1301 = vpop.permute.xlu0 %1300
        %v1304 = vsel %vm848, %v1284, %v1299
        %v1305 = vsel %vm848, %v1285, %v1301
        %1306 = vmatprep.subr.mxu0 0.0
        %1307 = vmatpush1.msra.mxu0 0.0
        %1308 = vmatprep.subr.mxu0 0.0
        %1309 = vmatpush1.msra.mxu0 0.0
        %1310 = vmatprep.subr.mxu0 0.0
        %1311 = vmatpush1.msra.mxu0 0.0
        %1312 = vmatprep.subr.mxu0 0.0
        %1313 = vmatpush1.msra.mxu0 0.0
        %1314 = vmatprep.subr.mxu0 0.0
        %1315 = vmatpush1.msra.mxu0 0.0
        %1316 = vmatprep.subr.mxu0 0.0
        %1317 = vmatpush1.msra.mxu0 0.0
        %1318 = vmatprep.subr.mxu0 0.0
        %1319 = vmatpush1.msra.mxu0 0.0
        %1320 = vmatprep.subr.mxu0 0.0
        %1321 = vmatpush1.msra.mxu0 0.0
        %1322 = vmatprep.subr.mxu0 0.0
        %1323 = vmatpush1.msra.mxu0 0.0
        %1324 = vmatprep.subr.mxu0 0.0
        %1325 = vmatpush1.msra.mxu0 0.0
        %1326 = vmatprep.subr.mxu0 0.0
        %1327 = vmatpush1.msra.mxu0 0.0
        %1328 = vmatprep.subr.mxu0 0.0
        %1329 = vmatpush1.msra.mxu0 0.0
        %1330 = vmatprep.subr.mxu0 0.0
        %1331 = vmatpush1.msra.mxu0 0.0
        %1332 = vmatprep.subr.mxu0 0.0
        %1333 = vmatpush1.msra.mxu0 0.0
        %1334 = vmatprep.subr.mxu0 0.0
        %1335 = vmatpush1.msra.mxu0 %v1305
        %1336 = vmatprep.subr.mxu0 0.0
        %1337 = vmatpush1.msra.mxu0 %v1304
        %1338 = vmatprep.subr.mxu0 0.0
        %1339 = vmatpush2.msra.mxu0 0.0
        %1340 = vmatprep.subr.mxu0 0.0
        %1341 = vmatpush2.msra.mxu0 0.0
        %1342 = vmatprep.subr.mxu0 0.0
        %1343 = vmatpush2.msra.mxu0 0.0
        %1344 = vmatprep.subr.mxu0 0.0
        %1345 = vmatpush2.msra.mxu0 0.0
        %1346 = vmatprep.subr.mxu0 0.0
        %1347 = vmatpush2.msra.mxu0 0.0
        %1348 = vmatprep.subr.mxu0 0.0
        %1349 = vmatpush2.msra.mxu0 0.0
        %1350 = vmatprep.subr.mxu0 0.0
        %1351 = vmatpush2.msra.mxu0 0.0
        %1352 = vmatprep.subr.mxu0 0.0
        %1353 = vmatpush2.msra.mxu0 0.0
        %1354 = vmatprep.subr.mxu0 0.0
        %1355 = vmatpush2.msra.mxu0 0.0
        %1356 = vmatprep.subr.mxu0 0.0
        %1357 = vmatpush2.msra.mxu0 0.0
        %1358 = vmatprep.subr.mxu0 0.0
        %1359 = vmatpush2.msra.mxu0 0.0
        %1360 = vmatprep.subr.mxu0 0.0
        %1361 = vmatpush2.msra.mxu0 0.0
        %1362 = vmatprep.subr.mxu0 0.0
        %1363 = vmatpush2.msra.mxu0 0.0
        %1364 = vmatprep.subr.mxu0 0.0
        %1365 = vmatpush2.msra.mxu0 0.0
        %1366 = vmatprep.subr.mxu0 0.0
        %1367 = vmatpush2.msra.mxu0 0.0
        %1368 = vmatprep.subr.mxu0 0.0
        %1369 = vmatpush2.msra.mxu0 0.0
        %1370 = vmatprep.mubr.f32.mxu0 0.0
        %1371 = vmatmul.mubr.f32.gmra.mxu0 %v853
        %v1372 = vpop.f32.mrf.mxu0
        %v1373 = vadd.f32 0.0, %v1372
        %v1374 = vpop.f32.mrf.mxu0
        %1375 = vmatprep.mubr.f32.mxu0 0.0
        %1376 = vmatmul.mubr.f32.gmra.mxu0 %v856
        %v1377 = vpop.f32.mrf.mxu0
        %v1378 = vadd.f32 0.0, %v1377
        %v1379 = vpop.f32.mrf.mxu0
        %1380 = vdwg.mxu0
        %v1381 = vmul.f32 %v1373, %v1373
        %v1382 = vmul.f32 %v1378, %v1378
        %1385 = vrot.lane.b32.xlu0 %v1381, 1
        %v1386 = vpop.permute.xlu0 %1385
        %1387 = vrot.lane.b32.xlu0 %v1382, 1
        %v1388 = vpop.permute.xlu0 %1387
        %v1391 = vsub.f32 %v1373, %v1386
        %v1392 = vsub.f32 %v1378, %v1388
        %v1393 = vadd.f32 %v1391, 1e-05
        %v1394 = vadd.f32 %v1392, 1e-05
        %v1395 = vrsqrt.pop %v1393
        %v1396 = vrsqrt.pop %v1394
        %1399 = vrot.lane.b32.xlu0 %v1262, 1
        %v1400 = vpop.permute.xlu0 %1399
        %1401 = vrot.lane.b32.xlu0 %v1263, 1
        %v1402 = vpop.permute.xlu0 %1401
        %v1405 = vmul.f32 %v1395, %v1400
        %v1406 = vmul.f32 %v1396, %v1402
        %v1407 = vsub.f32 %v1260, %v1373
        %v1408 = vsub.f32 %v1261, %v1378
        %1411 = vrot.lane.b32.xlu0 %v1405, 127
        %v1412 = vpop.permute.xlu0 %1411
        %1413 = vrot.lane.b32.xlu0 %v1406, 127
        %v1414 = vpop.permute.xlu0 %1413
        %v1417 = vmul.f32 %v1407, %v1412
        %v1418 = vmul.f32 %v1408, %v1414
        %v1419 = vadd.f32 %v1417, %v1264
        %v1420 = vadd.f32 %v1418, %v1265
        %1421 = vset.pattern.permute.xlu0 1
        %1422 = vperm.xlu0 %1421, %v1405
        %v1423 = vpop.permute.xlu0 %1422
        %1425 = vset.pattern.permute.xlu0 1
        %1426 = vperm.xlu0 %1425, %v1406
        %v1427 = vpop.permute.xlu0 %1426
        %v1429 = vmul.f32 %v1250, %v1423
        %v1430 = vmul.f32 %v1252, %v1423
        %v1431 = vmul.f32 %v1256, %v1427
        %v1432 = vmul.f32 %v1258, %v1427
        %1434 = vset.pattern.permute.xlu0 0
        %1435 = vperm.xlu0 %1434, %v1419
        %v1436 = vpop.permute.xlu0 %1435
        %1439 = vset.pattern.permute.xlu0 0
        %1440 = vperm.xlu0 %1439, %v1420
        %v1441 = vpop.permute.xlu0 %1440
        %v1443 = vadd.f32 %v1429, %v1436
        %v1444 = vadd.f32 %v1430, %v1436
        %v1445 = vadd.f32 %v1431, %v1441
        %v1446 = vadd.f32 %v1432, %v1441
        %v1447 = vxor.u32 %v1443, 2147483648
        %v1448 = vxor.u32 %v1444, 2147483648
        %v1449 = vxor.u32 %v1445, 2147483648
        %v1450 = vxor.u32 %v1446, 2147483648
        %v1451 = vmul.f32 %v1447, 1.442695
        %v1452 = vpow.pop %v1451
        %v1453 = vmul.f32 %v1448, 1.442695
        %v1454 = vpow.pop %v1453
        %v1455 = vmul.f32 %v1449, 1.442695
        %v1456 = vpow.pop %v1455
        %v1457 = vmul.f32 %v1450, 1.442695
        %v1458 = vpow.pop %v1457
        %v1459 = vadd.f32 %v1452, 1.0
        %v1460 = vadd.f32 %v1454, 1.0
        %v1461 = vadd.f32 %v1456, 1.0
        %v1462 = vadd.f32 %v1458, 1.0
        %v1463 = vrcp.pop %v1459
        %v1464 = vmul.f32 1.0, %v1463
        %v1465 = vrcp.pop %v1460
        %v1466 = vmul.f32 1.0, %v1465
        %v1467 = vrcp.pop %v1461
        %v1468 = vmul.f32 1.0, %v1467
        %v1469 = vrcp.pop %v1462
        %v1470 = vmul.f32 1.0, %v1469
        %v1471 = vmul.f32 %v1443, %v1464
        %v1472 = vmul.f32 %v1444, %v1466
        %v1473 = vmul.f32 %v1445, %v1468
        %v1474 = vmul.f32 %v1446, %v1470
        %v1475 = vld [vmem:[%s13] sm:$0xff]
        %v1476 = vld [vmem:[%s13 + $0x8] sm:$0xff]
        %v1477 = vld [vmem:[%s14] sm:$0xff]
        %v1478 = vld [vmem:[%s14 + $0x8] sm:$0xff]
        %1480 = vset.pattern.permute.xlu0 0
        %1481 = vperm.xlu0 %1480, %v1477
        %v1482 = vpop.permute.xlu0 %1481
        %1485 = vset.pattern.permute.xlu0 0
        %1486 = vperm.xlu0 %1485, %v1478
        %v1487 = vpop.permute.xlu0 %1486
        %vm1489 = vcmask 64512
        %v1491 = vsel %vm1489, %v1475, 0
        %v1494 = vsel %vm1489, %v1476, 0
        %1496 = vmatprep.subr.mxu0 0.0
        %1497 = vmatpush1.msra.mxu0 0.0
        %1498 = vmatprep.subr.mxu0 0.0
        %1499 = vmatpush1.msra.mxu0 0.0
        %1500 = vmatprep.subr.mxu0 0.0
        %1501 = vmatpush1.msra.mxu0 0.0
        %1502 = vmatprep.subr.mxu0 0.0
        %1503 = vmatpush1.msra.mxu0 0.0
        %1504 = vmatprep.subr.mxu0 0.0
        %1505 = vmatpush1.msra.mxu0 0.0
        %1506 = vmatprep.subr.mxu0 0.0
        %1507 = vmatpush1.msra.mxu0 0.0
        %1508 = vmatprep.subr.mxu0 0.0
        %1509 = vmatpush1.msra.mxu0 0.0
        %1510 = vmatprep.subr.mxu0 0.0
        %1511 = vmatpush1.msra.mxu0 0.0
        %1512 = vmatprep.subr.mxu0 0.0
        %1513 = vmatpush1.msra.mxu0 0.0
        %1514 = vmatprep.subr.mxu0 0.0
        %1515 = vmatpush1.msra.mxu0 0.0
        %1516 = vmatprep.subr.mxu0 0.0
        %1517 = vmatpush1.msra.mxu0 0.0
        %1518 = vmatprep.subr.mxu0 0.0
        %1519 = vmatpush1.msra.mxu0 0.0
        %1520 = vmatprep.subr.mxu0 0.0
        %1521 = vmatpush1.msra.mxu0 0.0
        %1522 = vmatprep.subr.mxu0 0.0
        %1523 = vmatpush1.msra.mxu0 0.0
        %1524 = vmatprep.subr.mxu0 0.0
        %1525 = vmatpush1.msra.mxu0 0.0
        %1526 = vmatprep.subr.mxu0 %v534
        %1527 = vmatpush1.msra.mxu0 %v533
        %1528 = vmatprep.subr.mxu0 0.0
        %1529 = vmatpush2.msra.mxu0 0.0
        %1530 = vmatprep.subr.mxu0 0.0
        %1531 = vmatpush2.msra.mxu0 0.0
        %1532 = vmatprep.subr.mxu0 0.0
        %1533 = vmatpush2.msra.mxu0 0.0
        %1534 = vmatprep.subr.mxu0 0.0
        %1535 = vmatpush2.msra.mxu0 0.0
        %1536 = vmatprep.subr.mxu0 0.0
        %1537 = vmatpush2.msra.mxu0 0.0
        %1538 = vmatprep.subr.mxu0 0.0
        %1539 = vmatpush2.msra.mxu0 0.0
        %1540 = vmatprep.subr.mxu0 0.0
        %1541 = vmatpush2.msra.mxu0 0.0
        %1542 = vmatprep.subr.mxu0 0.0
        %1543 = vmatpush2.msra.mxu0 0.0
        %1544 = vmatprep.subr.mxu0 0.0
        %1545 = vmatpush2.msra.mxu0 0.0
        %1546 = vmatprep.subr.mxu0 0.0
        %1547 = vmatpush2.msra.mxu0 0.0
        %1548 = vmatprep.subr.mxu0 0.0
        %1549 = vmatpush2.msra.mxu0 0.0
        %1550 = vmatprep.subr.mxu0 0.0
        %1551 = vmatpush2.msra.mxu0 0.0
        %1552 = vmatprep.subr.mxu0 0.0
        %1553 = vmatpush2.msra.mxu0 0.0
        %1554 = vmatprep.subr.mxu0 0.0
        %1555 = vmatpush2.msra.mxu0 0.0
        %1556 = vmatprep.subr.mxu0 0.0
        %1557 = vmatpush2.msra.mxu0 0.0
        %1558 = vmatprep.subr.mxu0 0.0
        %1559 = vmatpush2.msra.mxu0 0.0
        %1560 = vmatprep.mubr.f32.mxu0 0.0
        %1561 = vmatmul.mubr.f32.gmra.mxu0 %v1491
        %v1562 = vpop.f32.mrf.mxu0
        %v1563 = vadd.f32 %v1482, %v1562
        %v1564 = vpop.f32.mrf.mxu0
        %v1565 = vadd.f32 %v1482, %v1564
        %1566 = vmatprep.mubr.f32.mxu0 0.0
        %1567 = vmatmul.mubr.f32.gmra.mxu0 %v1494
        %v1568 = vpop.f32.mrf.mxu0
        %v1569 = vadd.f32 %v1487, %v1568
        %v1570 = vpop.f32.mrf.mxu0
        %v1571 = vadd.f32 %v1487, %v1570
        %1572 = vdwg.mxu0
        %v1573 = vadd.f32 %v1471, %v1563
        %v1574 = vadd.f32 %v1472, %v1565
        %v1575 = vadd.f32 %v1473, %v1569
        %v1576 = vadd.f32 %v1474, %v1571
        %1577 = vst [vmem:[%s517] sm:$0xff] %v1573
        %1578 = vst [vmem:[%s517 + $0x8] sm:$0xff] %v1574
        %1579 = vst [vmem:[%s517 + $0x10] sm:$0xff] %v1575
        %1580 = vst [vmem:[%s517 + $0x18] sm:$0xff] %v1576
        %s1581 = sand.u32 %s367, 1
        %s1582 = scalar_lea.sflag [#allocation3], %s1581
        %s1583 = sand.u32 %s367, 1
        %s1584 = smul.addr %s1583, 32
        %s1585 = scalar_lea.vmem [#allocation2], %s1584
        // Predicated region
        $region81: #{tpu_custom_call.1} parent=79 // pred_check
          %p1586 = pneg %p377
        $region82: #{tpu_custom_call.1} parent=79 // pred_check_branch
          %1588 = sbr.rel (%p1586) target = $region84
        $region83: #{tpu_custom_call.1} parent=79 // pred_region
          %s1590 = ssub.s32 512, 512
          %1591 = vsyncadd %s1582, %s1590
          %s1592 = smul.addr %s29, 4
          %s1593 = smul.addr %s1592, 128
          %s1594 = scalar_lea.hbm %s15, %s1593
          %s1595 = sshll.u32 %s1585, 4
          %s1596 = int_to_ptr.vmem [resolvable:$true] %s1595
          %1601 = dma.vmem_to_hbm [thread:$0]  %s1596, 512, %s1594, %s1582, 256, 256, 16
        $region84: #{tpu_custom_call.1} parent=79 // pred_fallthru
          _
      $region80: #{tpu_custom_call.1} parent=5 // pred_fallthru
        _
      %p1602 = scmp.le.s32.totalorder 2, %s24
      // Predicated region
      $region85: #{tpu_custom_call.1} parent=5 // pred_check
        %p1603 = pneg %p1602
      $region86: #{tpu_custom_call.1} parent=5 // pred_check_branch
        %1605 = sbr.rel (%p1603) target = $region88
      $region87: #{tpu_custom_call.1} parent=5 // pred_region
        %s1606 = ssub.s32 %s24, 2
        // Predicated region
        $region89: #{tpu_custom_call.1} parent=87 // pred_check
          %p1607 = pneg %p383
        $region90: #{tpu_custom_call.1} parent=87 // pred_check_branch
          %1609 = sbr.rel (%p1607) target = $region92
        $region91: #{tpu_custom_call.1} parent=87 // pred_region
          %s1610 = sand.u32 %s368, 1
          %s1611 = scalar_lea.sflag [#allocation3], %s1610
          %s1612 = sand.u32 %s368, 1
          %s1613 = smul.addr %s1612, 32
          %s1614 = scalar_lea.vmem [#allocation2], %s1613
          %1615 = dma.done %s1611, 512
        $region92: #{tpu_custom_call.1} parent=87 // pred_fallthru
          _
      $region88: #{tpu_custom_call.1} parent=5 // pred_fallthru
        _
    $region6: #{tpu_custom_call.1} parent=1 // loop_footer
      %s28 = sadd.s32 1, %s24
    $region7: #{tpu_custom_call.1} parent=1 // loop_footer_branch
      %23 = sbr.rel target = $region3
    $region8: #{tpu_custom_call.1} parent=1 // loop_exit
      _
    %1616 = vsyncpa [#allocation3], 1
    %s1617 = scalar_lea.sflag [#allocation3], 1
    %1618 = vsyncpa %s1617, 1

</llo_original>
